<compile_context>
chip_gen: v7x
topology: tpu7x:2x2x1
jax: 0.10.0
libtpu: 0.0.40
codegen_flags: <defaults>
</compile_context>

<pallas_src>
import functools

import numpy as np
import jax
import jax.numpy as jnp
from jax import lax
from jax.experimental import pallas as pl
from jax.experimental.pallas import tpu as pltpu


# tap order t = kh*3 + kw, offsets (dh, dw) = (kh-1, kw-1)
_TAPS = tuple((kh - 1, kw - 1) for kh in range(3) for kw in range(3))


# ----------------------------------------------------------------------------
# Fused DecoderBlock kernel (one batch element per grid step)
# ----------------------------------------------------------------------------
def _decoder_block_kernel(x_ref, sc_ref, scat_ref, wq_ref, w1_ref, w2_ref,
                          ws_ref, mask_ref, aff_ref, o_ref,
                          z_scr, tap_scr, *, W2):
    """Layout: channels on sublanes, flattened spatial (H2*W2) on lanes.

      x_ref    : (1, Cin,  H*W)     decoder input (compute dtype)
      sc_ref   : (1, Cout, H2*W2)   skip connection (compute dtype)
      scat_ref : (4, H*W,  H2*W2)   0/1 pixel-shuffle scatter per 2x2 parity (f32)
      wq_ref   : (4, Cout, Cin)     ConvTranspose2d weights per parity (compute dtype)
      w1_ref   : (Cout, 9*Cin2)     conv1 weights, taps concatenated on contraction axis
      w2_ref   : (Cout, 9*Cin2)     conv2 weights (input channels zero-padded Cout->Cin2)
      ws_ref   : (Cout, Cin2)       1x1 shortcut conv weights
      mask_ref : (9, H2*W2)         per-tap validity mask ('same' zero padding), f32
      aff_ref  : (10, Cout, 1)      [bt, b1, s1, t1, b2, s2, t2, bs, ss, ts], f32
      o_ref    : (1, Cout, H2*W2)   output (f32)
      z_scr    : (Cin2, H2*W2)      f32 scratch: concat(upsampled, shortcut)
      tap_scr  : (9*Cin2, H2*W2)    compute-dtype scratch: im2col tap matrix
    """
    cout = o_ref.shape[1]
    s2 = o_ref.shape[2]
    cin2 = z_scr.shape[0]
    cdt = tap_scr.dtype

    # ---- ConvTranspose2d(k=2, s=2): per-parity channel mix + 0/1 scatter (both on MXU)
    up = jnp.zeros((cout, s2), jnp.float32)
    for d in range(4):
        r = jnp.dot(wq_ref[d], x_ref[0], preferred_element_type=jnp.float32)   # (Cout, H*W)
        up = up + jnp.dot(r, scat_ref[d], preferred_element_type=jnp.float32)  # (Cout, S2)
    up = up + aff_ref[0]                                  # transposed-conv bias

    # ---- z = concat([upsampled, shortcut], channel axis) kept in an f32 scratch
    z_scr[pl.ds(0, cout), :] = up
    z_scr[pl.ds(cout, cout), :] = sc_ref[0].astype(jnp.float32)
    z = z_scr[...]                                        # (Cin2, S2)

    def build_taps(src, rows):
        # 9 shifted 'same'-padding taps via lane rolls (XLU) + boundary masks,
        # written into tap_scr with a fixed Cin2 row stride per tap.
        for t, (dh, dw) in enumerate(_TAPS):
            sh = (-(dh * W2 + dw)) % s2
            rolled = src if sh == 0 else pltpu.roll(src, shift=sh, axis=1)
            tap_scr[pl.ds(t * cin2, rows), :] = (rolled * mask_ref[t]).astype(cdt)

    # ---- conv1 (3x3 'same') as one fat matmul over K = 9*Cin2
    build_taps(z, cin2)
    h1 = jnp.dot(w1_ref[...], tap_scr[...], preferred_element_type=jnp.float32)
    y1 = jnp.maximum(h1 + aff_ref[1], 0.0) * aff_ref[2] + aff_ref[3]   # bias, relu, BN

    # ---- conv2 (3x3 'same'); only the first Cout rows of each tap block are live,
    #      w2_ref holds zeros for the remaining (stale) rows.
    build_taps(y1, cout)
    h2 = jnp.dot(w2_ref[...], tap_scr[...], preferred_element_type=jnp.float32)
    y2 = jnp.maximum(h2 + aff_ref[4], 0.0) * aff_ref[5] + aff_ref[6]

    # ---- shortcut: 1x1 conv + BN on z
    s = jnp.dot(ws_ref[...], z.astype(cdt), preferred_element_type=jnp.float32)
    s = (s + aff_ref[7]) * aff_ref[8] + aff_ref[9]

    o_ref[0] = (y2 + s).astype(o_ref.dtype)


# ----------------------------------------------------------------------------
# Host-side constant builders (pixel-shuffle scatter matrices + tap masks)
# ----------------------------------------------------------------------------
def _build_scatter_and_masks(H, W):
    H2, W2 = 2 * H, 2 * W
    HW, S2 = H * W, H2 * W2
    yy, xx = np.meshgrid(np.arange(H), np.arange(W), indexing="ij")
    src = (yy * W + xx).reshape(-1)
    scat = np.zeros((4, HW, S2), np.float32)
    for dy in range(2):
        for dx in range(2):
            dst = ((2 * yy + dy) * W2 + (2 * xx + dx)).reshape(-1)
            scat[dy * 2 + dx, src, dst] = 1.0
    jj = np.arange(S2)
    YY, XX = jj // W2, jj % W2
    masks = np.zeros((9, S2), np.float32)
    for t, (dh, dw) in enumerate(_TAPS):
        masks[t] = ((YY + dh >= 0) & (YY + dh < H2) &
                    (XX + dw >= 0) & (XX + dw < W2)).astype(np.float32)
    return scat, masks


# ----------------------------------------------------------------------------
# Wrapper: full DecoderBlock forward (NCHW in / NCHW out, like PyTorch)
# ----------------------------------------------------------------------------
@functools.partial(jax.jit, static_argnames=("compute_dtype",))
def decoder_block_forward(x_nchw, shortcut_nchw, P, compute_dtype=jnp.bfloat16):
    N, Cin, H, W = x_nchw.shape
    Cout = P["bt"].shape[0]
    Cin2 = 2 * Cout
    H2, W2 = 2 * H, 2 * W
    HW, S2 = H * W, H2 * W2
    cdt = jnp.dtype(compute_dtype)

    # NCHW already puts channels on the sublane axis once spatial is flattened
    # onto the lane axis -> only reshapes (no transposes) at the edges.
    x_flat = x_nchw.reshape(N, Cin, HW).astype(cdt)
    sc_flat = shortcut_nchw.reshape(N, Cout, S2).astype(cdt)

    scat_np, mask_np = _build_scatter_and_masks(H, W)
    scat = jnp.asarray(scat_np)                 # f32: exact 0/1 scatter
    masks = jnp.asarray(mask_np)                # f32

    # ConvTranspose2d weight (Cin, Cout, 2, 2) -> (parity = dy*2+dx, Cout, Cin)
    wq = jnp.transpose(P["wt"], (2, 3, 1, 0)).reshape(4, Cout, Cin).astype(cdt)
    # 3x3 conv weights HWIO -> (Cout, 9*Cin2) with taps along the contraction axis
    w1r = jnp.transpose(P["w1"], (3, 0, 1, 2)).reshape(Cout, 9 * Cin2).astype(cdt)
    w2t = jnp.transpose(P["w2"], (3, 0, 1, 2))                       # (Cout, 3, 3, Cout)
    w2t = jnp.pad(w2t, ((0, 0), (0, 0), (0, 0), (0, Cin2 - Cout)))   # pad in-ch to Cin2
    w2r = w2t.reshape(Cout, 9 * Cin2).astype(cdt)
    wsr = jnp.transpose(P["ws"], (1, 0)).astype(cdt)                 # (Cout, Cin2)

    # eval-mode BatchNorm folded to per-channel affine (running_mean=0, running_var=1)
    eps = 1e-5
    inv = 1.0 / jnp.sqrt(1.0 + eps)
    aff = jnp.stack([P["bt"],
                     P["b1"], P["g1"] * inv, P["be1"],
                     P["b2"], P["g2"] * inv, P["be2"],
                     P["bs"], P["gs"] * inv, P["bes"]]).astype(jnp.float32)
    aff = aff.reshape(10, Cout, 1)

    kernel = functools.partial(_decoder_block_kernel, W2=W2)
    out_flat = pl.pallas_call(
        kernel,
        out_shape=jax.ShapeDtypeStruct((N, Cout, S2), jnp.float32),
        grid=(N,),
        in_specs=[
            pl.BlockSpec((1, Cin, HW), lambda n: (n, 0, 0)),
            pl.BlockSpec((1, Cout, S2), lambda n: (n, 0, 0)),
            pl.BlockSpec((4, HW, S2), lambda n: (0, 0, 0)),
            pl.BlockSpec((4, Cout, Cin), lambda n: (0, 0, 0)),
            pl.BlockSpec((Cout, 9 * Cin2), lambda n: (0, 0)),
            pl.BlockSpec((Cout, 9 * Cin2), lambda n: (0, 0)),
            pl.BlockSpec((Cout, Cin2), lambda n: (0, 0)),
            pl.BlockSpec((9, S2), lambda n: (0, 0)),
            pl.BlockSpec((10, Cout, 1), lambda n: (0, 0, 0)),
        ],
        out_specs=pl.BlockSpec((1, Cout, S2), lambda n: (n, 0, 0)),
        scratch_shapes=[
            pltpu.VMEM((Cin2, S2), jnp.float32),     # z = concat(up, shortcut)
            pltpu.VMEM((9 * Cin2, S2), cdt),         # im2col tap matrix
        ],
        compiler_params=pltpu.CompilerParams(
            dimension_semantics=("parallel",)),
    )(x_flat, sc_flat, scat, wq, w1r, w2r, wsr, masks, aff)

    return out_flat.reshape(N, Cout, H2, W2)


# ----------------------------------------------------------------------------
# Pure-JAX reference (lax convs).  With cast_dtype set, inputs/weights and the
# intermediates that the kernel rounds are cast at the same points, so the bf16
# kernel path can be checked with a tight tolerance as well.
# ----------------------------------------------------------------------------
def reference(x_nchw, shortcut_nchw, P, cast_dtype=None):
    eps = 1e-5
    hi = lax.Precision.HIGHEST
    dn = ("NHWC", "HWIO", "NHWC")
    if cast_dtype is None:
        c = lambda v: v
    else:
        c = lambda v: v.astype(cast_dtype).astype(jnp.float32)

    x = jnp.transpose(x_nchw, (0, 2, 3, 1))
    sc = jnp.transpose(shortcut_nchw, (0, 2, 3, 1))

    # transposed conv == dilated-input conv with flipped, in/out-swapped kernel
    w_up = jnp.flip(jnp.transpose(P["wt"], (2, 3, 0, 1)), axis=(0, 1))
    y = lax.conv_general_dilated(c(x), c(w_up), (1, 1), ((1, 1), (1, 1)),
                                 lhs_dilation=(2, 2), dimension_numbers=dn,
                                 precision=hi) + P["bt"]
    z = jnp.concatenate([y, c(sc)], axis=-1)

    def bn(v, g, b):
        return v * (g / jnp.sqrt(1.0 + eps)) + b

    h = lax.conv_general_dilated(c(z), c(P["w1"]), (1, 1), "SAME",
                                 dimension_numbers=dn, precision=hi) + P["b1"]
    h = bn(jnp.maximum(h, 0.0), P["g1"], P["be1"])
    h = lax.conv_general_dilated(c(h), c(P["w2"]), (1, 1), "SAME",
                                 dimension_numbers=dn, precision=hi) + P["b2"]
    h = bn(jnp.maximum(h, 0.0), P["g2"], P["be2"])
    s = jnp.einsum("nhwc,cd->nhwd", c(z), c(P["ws"]), precision=hi) + P["bs"]
    s = bn(s, P["gs"], P["bes"])
    return jnp.transpose(h + s, (0, 3, 1, 2))


def init_params(key, Cin, Cout):
    ks = iter(jax.random.split(key, 20))
    C2 = 2 * Cout
    nrm = lambda k, shp, s=0.2: s * jax.random.normal(k, shp, jnp.float32)
    return dict(
        wt=nrm(next(ks), (Cin, Cout, 2, 2)),         # ConvTranspose2d weight (torch layout)
        bt=nrm(next(ks), (Cout,), 0.1),
        w1=nrm(next(ks), (3, 3, C2, Cout)),          # HWIO
        b1=nrm(next(ks), (Cout,), 0.1),
        g1=1.0 + nrm(next(ks), (Cout,), 0.1),
        be1=nrm(next(ks), (Cout,), 0.1),
        w2=nrm(next(ks), (3, 3, Cout, Cout)),        # HWIO
        b2=nrm(next(ks), (Cout,), 0.1),
        g2=1.0 + nrm(next(ks), (Cout,), 0.1),
        be2=nrm(next(ks), (Cout,), 0.1),
        ws=nrm(next(ks), (C2, Cout)),                # 1x1 shortcut conv
        bs=nrm(next(ks), (Cout,), 0.1),
        gs=1.0 + nrm(next(ks), (Cout,), 0.1),
        bes=nrm(next(ks), (Cout,), 0.1),
    )


if __name__ == "__main__":
    key = jax.random.PRNGKey(0)
    k_x, k_sc, k_p = jax.random.split(key, 3)

    N, Cin, Cout, H, W = 2, 8, 4, 8, 8
    x = jax.random.normal(k_x, (N, Cin, H, W), jnp.float32)               # decoder input
    shortcut = jax.random.normal(k_sc, (N, Cout, 2 * H, 2 * W), jnp.float32)
    params = init_params(k_p, Cin, Cout)

    # bf16 MXU path (default) -- checked against a precision-matched reference
    out_bf16 = jax.block_until_ready(
        decoder_block_forward(x, shortcut, params, compute_dtype=jnp.bfloat16))
    ref_bf16 = reference(x, shortcut, params, cast_dtype=jnp.bfloat16)
    err_bf16 = float(jnp.max(jnp.abs(out_bf16 - ref_bf16)))

    # f32 path -- checked against the full-precision reference
    out_f32 = jax.block_until_ready(
        decoder_block_forward(x, shortcut, params, compute_dtype=jnp.float32))
    ref_f32 = reference(x, shortcut, params)
    err_f32 = float(jnp.max(jnp.abs(out_f32 - ref_f32)))

    assert out_bf16.shape == (N, Cout, 2 * H, 2 * W), out_bf16.shape
    assert err_bf16 < 2e-3, f"bf16 max abs error {err_bf16}"
    assert err_f32 < 1e-3, f"f32 max abs error {err_f32}"
    print("KERNEL_OK")
</pallas_src>

<mosaic_0001>
module attributes {stable_mosaic.version = 11 : i64} {
  func.func @_decoder_block_kernel(%arg0: i32, %arg1: memref<1x8x64xbf16, #tpu.memory_space<vmem>>, %arg2: memref<1x4x256xbf16, #tpu.memory_space<vmem>>, %arg3: memref<4x64x256xf32, #tpu.memory_space<vmem>>, %arg4: memref<4x4x8xbf16, #tpu.memory_space<vmem>>, %arg5: memref<4x72xbf16, #tpu.memory_space<vmem>>, %arg6: memref<4x72xbf16, #tpu.memory_space<vmem>>, %arg7: memref<4x8xbf16, #tpu.memory_space<vmem>>, %arg8: memref<9x256xf32, #tpu.memory_space<vmem>>, %arg9: memref<10x4x1xf32, #tpu.memory_space<vmem>>, %arg10: memref<1x4x256xf32, #tpu.memory_space<vmem>>, %arg11: memref<8x256xf32, #tpu.memory_space<vmem>>, %arg12: memref<72x256xbf16, #tpu.memory_space<vmem>>) attributes {dimension_semantics = [#tpu.dimension_semantics<parallel>], iteration_bounds = array<i64: 2>, scalar_prefetch = 0 : i64, scratch_operands = 2 : i64, tpu.core_type = #tpu.core_type<tc>, window_params = [{transform_indices = @transform_0, window_bounds = array<i64: 1, 8, 64>}, {transform_indices = @transform_1, window_bounds = array<i64: 1, 4, 256>}, {pipeline_mode = #tpu.pipeline_mode<synchronous>, transform_indices = @transform_2, window_bounds = array<i64: 4, 64, 256>}, {pipeline_mode = #tpu.pipeline_mode<synchronous>, transform_indices = @transform_3, window_bounds = array<i64: 4, 4, 8>}, {pipeline_mode = #tpu.pipeline_mode<synchronous>, transform_indices = @transform_4, window_bounds = array<i64: 4, 72>}, {pipeline_mode = #tpu.pipeline_mode<synchronous>, transform_indices = @transform_5, window_bounds = array<i64: 4, 72>}, {pipeline_mode = #tpu.pipeline_mode<synchronous>, transform_indices = @transform_6, window_bounds = array<i64: 4, 8>}, {pipeline_mode = #tpu.pipeline_mode<synchronous>, transform_indices = @transform_7, window_bounds = array<i64: 9, 256>}, {pipeline_mode = #tpu.pipeline_mode<synchronous>, transform_indices = @transform_8, window_bounds = array<i64: 10, 4, 1>}, {transform_indices = @transform_9, window_bounds = array<i64: 1, 4, 256>}]} {
    %cst = arith.constant 0.000000e+00 : f32
    %0 = vector.broadcast %cst : f32 to vector<4x256xf32>
    %c0 = arith.constant 0 : index
    %c0_0 = arith.constant 0 : index
    %c0_1 = arith.constant 0 : index
    %1 = vector.load %arg4[%c0, %c0_0, %c0_1] : memref<4x4x8xbf16, #tpu.memory_space<vmem>>, vector<1x4x8xbf16>
    %2 = vector.shape_cast %1 : vector<1x4x8xbf16> to vector<4x8xbf16>
    %c0_2 = arith.constant 0 : index
    %c0_3 = arith.constant 0 : index
    %c0_4 = arith.constant 0 : index
    %3 = vector.load %arg1[%c0_2, %c0_3, %c0_4] : memref<1x8x64xbf16, #tpu.memory_space<vmem>>, vector<1x8x64xbf16>
    %4 = vector.shape_cast %3 : vector<1x8x64xbf16> to vector<8x64xbf16>
    %cst_5 = arith.constant dense<0.000000e+00> : vector<4x64xf32>
    %5 = tpu.matmul %2, %4, %cst_5 {dimension_numbers = #tpu.dot_dimension_numbers<[1], [0], [0], [1], [0, 0, 1, 1], [], []>} : vector<4x8xbf16>, vector<8x64xbf16>, vector<4x64xf32> -> vector<4x64xf32>
    %c0_6 = arith.constant 0 : index
    %c0_7 = arith.constant 0 : index
    %c0_8 = arith.constant 0 : index
    %6 = vector.load %arg3[%c0_6, %c0_7, %c0_8] : memref<4x64x256xf32, #tpu.memory_space<vmem>>, vector<1x64x256xf32>
    %7 = vector.shape_cast %6 : vector<1x64x256xf32> to vector<64x256xf32>
    %cst_9 = arith.constant dense<0.000000e+00> : vector<4x256xf32>
    %8 = tpu.matmul %5, %7, %cst_9 {dimension_numbers = #tpu.dot_dimension_numbers<[1], [0], [0], [1], [0, 0, 1, 1], [], []>} : vector<4x64xf32>, vector<64x256xf32>, vector<4x256xf32> -> vector<4x256xf32>
    %9 = arith.addf %0, %8 : vector<4x256xf32>
    %c1 = arith.constant 1 : index
    %c0_10 = arith.constant 0 : index
    %c0_11 = arith.constant 0 : index
    %10 = vector.load %arg4[%c1, %c0_10, %c0_11] : memref<4x4x8xbf16, #tpu.memory_space<vmem>>, vector<1x4x8xbf16>
    %11 = vector.shape_cast %10 : vector<1x4x8xbf16> to vector<4x8xbf16>
    %c0_12 = arith.constant 0 : index
    %c0_13 = arith.constant 0 : index
    %c0_14 = arith.constant 0 : index
    %12 = vector.load %arg1[%c0_12, %c0_13, %c0_14] : memref<1x8x64xbf16, #tpu.memory_space<vmem>>, vector<1x8x64xbf16>
    %13 = vector.shape_cast %12 : vector<1x8x64xbf16> to vector<8x64xbf16>
    %cst_15 = arith.constant dense<0.000000e+00> : vector<4x64xf32>
    %14 = tpu.matmul %11, %13, %cst_15 {dimension_numbers = #tpu.dot_dimension_numbers<[1], [0], [0], [1], [0, 0, 1, 1], [], []>} : vector<4x8xbf16>, vector<8x64xbf16>, vector<4x64xf32> -> vector<4x64xf32>
    %c1_16 = arith.constant 1 : index
    %c0_17 = arith.constant 0 : index
    %c0_18 = arith.constant 0 : index
    %15 = vector.load %arg3[%c1_16, %c0_17, %c0_18] : memref<4x64x256xf32, #tpu.memory_space<vmem>>, vector<1x64x256xf32>
    %16 = vector.shape_cast %15 : vector<1x64x256xf32> to vector<64x256xf32>
    %cst_19 = arith.constant dense<0.000000e+00> : vector<4x256xf32>
    %17 = tpu.matmul %14, %16, %cst_19 {dimension_numbers = #tpu.dot_dimension_numbers<[1], [0], [0], [1], [0, 0, 1, 1], [], []>} : vector<4x64xf32>, vector<64x256xf32>, vector<4x256xf32> -> vector<4x256xf32>
    %18 = arith.addf %9, %17 : vector<4x256xf32>
    %c2 = arith.constant 2 : index
    %c0_20 = arith.constant 0 : index
    %c0_21 = arith.constant 0 : index
    %19 = vector.load %arg4[%c2, %c0_20, %c0_21] : memref<4x4x8xbf16, #tpu.memory_space<vmem>>, vector<1x4x8xbf16>
    %20 = vector.shape_cast %19 : vector<1x4x8xbf16> to vector<4x8xbf16>
    %c0_22 = arith.constant 0 : index
    %c0_23 = arith.constant 0 : index
    %c0_24 = arith.constant 0 : index
    %21 = vector.load %arg1[%c0_22, %c0_23, %c0_24] : memref<1x8x64xbf16, #tpu.memory_space<vmem>>, vector<1x8x64xbf16>
    %22 = vector.shape_cast %21 : vector<1x8x64xbf16> to vector<8x64xbf16>
    %cst_25 = arith.constant dense<0.000000e+00> : vector<4x64xf32>
    %23 = tpu.matmul %20, %22, %cst_25 {dimension_numbers = #tpu.dot_dimension_numbers<[1], [0], [0], [1], [0, 0, 1, 1], [], []>} : vector<4x8xbf16>, vector<8x64xbf16>, vector<4x64xf32> -> vector<4x64xf32>
    %c2_26 = arith.constant 2 : index
    %c0_27 = arith.constant 0 : index
    %c0_28 = arith.constant 0 : index
    %24 = vector.load %arg3[%c2_26, %c0_27, %c0_28] : memref<4x64x256xf32, #tpu.memory_space<vmem>>, vector<1x64x256xf32>
    %25 = vector.shape_cast %24 : vector<1x64x256xf32> to vector<64x256xf32>
    %cst_29 = arith.constant dense<0.000000e+00> : vector<4x256xf32>
    %26 = tpu.matmul %23, %25, %cst_29 {dimension_numbers = #tpu.dot_dimension_numbers<[1], [0], [0], [1], [0, 0, 1, 1], [], []>} : vector<4x64xf32>, vector<64x256xf32>, vector<4x256xf32> -> vector<4x256xf32>
    %27 = arith.addf %18, %26 : vector<4x256xf32>
    %c3 = arith.constant 3 : index
    %c0_30 = arith.constant 0 : index
    %c0_31 = arith.constant 0 : index
    %28 = vector.load %arg4[%c3, %c0_30, %c0_31] : memref<4x4x8xbf16, #tpu.memory_space<vmem>>, vector<1x4x8xbf16>
    %29 = vector.shape_cast %28 : vector<1x4x8xbf16> to vector<4x8xbf16>
    %c0_32 = arith.constant 0 : index
    %c0_33 = arith.constant 0 : index
    %c0_34 = arith.constant 0 : index
    %30 = vector.load %arg1[%c0_32, %c0_33, %c0_34] : memref<1x8x64xbf16, #tpu.memory_space<vmem>>, vector<1x8x64xbf16>
    %31 = vector.shape_cast %30 : vector<1x8x64xbf16> to vector<8x64xbf16>
    %cst_35 = arith.constant dense<0.000000e+00> : vector<4x64xf32>
    %32 = tpu.matmul %29, %31, %cst_35 {dimension_numbers = #tpu.dot_dimension_numbers<[1], [0], [0], [1], [0, 0, 1, 1], [], []>} : vector<4x8xbf16>, vector<8x64xbf16>, vector<4x64xf32> -> vector<4x64xf32>
    %c3_36 = arith.constant 3 : index
    %c0_37 = arith.constant 0 : index
    %c0_38 = arith.constant 0 : index
    %33 = vector.load %arg3[%c3_36, %c0_37, %c0_38] : memref<4x64x256xf32, #tpu.memory_space<vmem>>, vector<1x64x256xf32>
    %34 = vector.shape_cast %33 : vector<1x64x256xf32> to vector<64x256xf32>
    %cst_39 = arith.constant dense<0.000000e+00> : vector<4x256xf32>
    %35 = tpu.matmul %32, %34, %cst_39 {dimension_numbers = #tpu.dot_dimension_numbers<[1], [0], [0], [1], [0, 0, 1, 1], [], []>} : vector<4x64xf32>, vector<64x256xf32>, vector<4x256xf32> -> vector<4x256xf32>
    %36 = arith.addf %27, %35 : vector<4x256xf32>
    %c0_40 = arith.constant 0 : index
    %c0_41 = arith.constant 0 : index
    %c0_42 = arith.constant 0 : index
    %37 = vector.load %arg9[%c0_40, %c0_41, %c0_42] : memref<10x4x1xf32, #tpu.memory_space<vmem>>, vector<1x4x1xf32>
    %38 = vector.shape_cast %37 : vector<1x4x1xf32> to vector<4x1xf32>
    %39 = vector.broadcast %38 : vector<4x1xf32> to vector<4x256xf32>
    %40 = arith.addf %36, %39 : vector<4x256xf32>
    %c0_43 = arith.constant 0 : index
    %c0_44 = arith.constant 0 : index
    %41 = vector.load %arg11[%c0_43, %c0_44] : memref<8x256xf32, #tpu.memory_space<vmem>>, vector<4x256xf32>
    tpu.vector_store %arg11[%c0_43, %c0_44], %40 {strides = array<i32>} : memref<8x256xf32, #tpu.memory_space<vmem>>, vector<4x256xf32>,
    %c0_45 = arith.constant 0 : index
    %c0_46 = arith.constant 0 : index
    %c0_47 = arith.constant 0 : index
    %42 = vector.load %arg2[%c0_45, %c0_46, %c0_47] : memref<1x4x256xbf16, #tpu.memory_space<vmem>>, vector<1x4x256xbf16>
    %43 = vector.shape_cast %42 : vector<1x4x256xbf16> to vector<4x256xbf16>
    %44 = arith.extf %43 : vector<4x256xbf16> to vector<4x256xf32>
    %c4 = arith.constant 4 : index
    %c0_48 = arith.constant 0 : index
    %45 = vector.load %arg11[%c4, %c0_48] : memref<8x256xf32, #tpu.memory_space<vmem>>, vector<4x256xf32>
    tpu.vector_store %arg11[%c4, %c0_48], %44 {strides = array<i32>} : memref<8x256xf32, #tpu.memory_space<vmem>>, vector<4x256xf32>,
    %c0_49 = arith.constant 0 : index
    %c0_50 = arith.constant 0 : index
    %46 = vector.load %arg11[%c0_49, %c0_50] : memref<8x256xf32, #tpu.memory_space<vmem>>, vector<8x256xf32>
    %c17_i32 = arith.constant 17 : i32
    %47 = tpu.dynamic_rotate %46 by %c17_i32 dim 1 : vector<8x256xf32>, i32 -> vector<8x256xf32>
    %c0_51 = arith.constant 0 : index
    %c0_52 = arith.constant 0 : index
    %48 = vector.load %arg8[%c0_51, %c0_52] : memref<9x256xf32, #tpu.memory_space<vmem>>, vector<1x256xf32>
    %49 = vector.shape_cast %48 : vector<1x256xf32> to vector<256xf32>
    %50 = vector.shape_cast %49 : vector<256xf32> to vector<1x256xf32>
    %51 = vector.broadcast %50 : vector<1x256xf32> to vector<8x256xf32>
    %52 = arith.mulf %47, %51 : vector<8x256xf32>
    %53 = arith.truncf %52 : vector<8x256xf32> to vector<8x256xbf16>
    %c0_53 = arith.constant 0 : index
    %c0_54 = arith.constant 0 : index
    %54 = vector.load %arg12[%c0_53, %c0_54] : memref<72x256xbf16, #tpu.memory_space<vmem>>, vector<8x256xbf16>
    tpu.vector_store %arg12[%c0_53, %c0_54], %53 {strides = array<i32>} : memref<72x256xbf16, #tpu.memory_space<vmem>>, vector<8x256xbf16>,
    %c16_i32 = arith.constant 16 : i32
    %55 = tpu.dynamic_rotate %46 by %c16_i32 dim 1 : vector<8x256xf32>, i32 -> vector<8x256xf32>
    %c1_55 = arith.constant 1 : index
    %c0_56 = arith.constant 0 : index
    %56 = vector.load %arg8[%c1_55, %c0_56] : memref<9x256xf32, #tpu.memory_space<vmem>>, vector<1x256xf32>
    %57 = vector.shape_cast %56 : vector<1x256xf32> to vector<256xf32>
    %58 = vector.shape_cast %57 : vector<256xf32> to vector<1x256xf32>
    %59 = vector.broadcast %58 : vector<1x256xf32> to vector<8x256xf32>
    %60 = arith.mulf %55, %59 : vector<8x256xf32>
    %61 = arith.truncf %60 : vector<8x256xf32> to vector<8x256xbf16>
    %c8 = arith.constant 8 : index
    %c0_57 = arith.constant 0 : index
    %62 = vector.load %arg12[%c8, %c0_57] : memref<72x256xbf16, #tpu.memory_space<vmem>>, vector<8x256xbf16>
    tpu.vector_store %arg12[%c8, %c0_57], %61 {strides = array<i32>} : memref<72x256xbf16, #tpu.memory_space<vmem>>, vector<8x256xbf16>,
    %c15_i32 = arith.constant 15 : i32
    %63 = tpu.dynamic_rotate %46 by %c15_i32 dim 1 : vector<8x256xf32>, i32 -> vector<8x256xf32>
    %c2_58 = arith.constant 2 : index
    %c0_59 = arith.constant 0 : index
    %64 = vector.load %arg8[%c2_58, %c0_59] : memref<9x256xf32, #tpu.memory_space<vmem>>, vector<1x256xf32>
    %65 = vector.shape_cast %64 : vector<1x256xf32> to vector<256xf32>
    %66 = vector.shape_cast %65 : vector<256xf32> to vector<1x256xf32>
    %67 = vector.broadcast %66 : vector<1x256xf32> to vector<8x256xf32>
    %68 = arith.mulf %63, %67 : vector<8x256xf32>
    %69 = arith.truncf %68 : vector<8x256xf32> to vector<8x256xbf16>
    %c16 = arith.constant 16 : index
    %c0_60 = arith.constant 0 : index
    %70 = vector.load %arg12[%c16, %c0_60] : memref<72x256xbf16, #tpu.memory_space<vmem>>, vector<8x256xbf16>
    tpu.vector_store %arg12[%c16, %c0_60], %69 {strides = array<i32>} : memref<72x256xbf16, #tpu.memory_space<vmem>>, vector<8x256xbf16>,
    %c1_i32 = arith.constant 1 : i32
    %71 = tpu.dynamic_rotate %46 by %c1_i32 dim 1 : vector<8x256xf32>, i32 -> vector<8x256xf32>
    %c3_61 = arith.constant 3 : index
    %c0_62 = arith.constant 0 : index
    %72 = vector.load %arg8[%c3_61, %c0_62] : memref<9x256xf32, #tpu.memory_space<vmem>>, vector<1x256xf32>
    %73 = vector.shape_cast %72 : vector<1x256xf32> to vector<256xf32>
    %74 = vector.shape_cast %73 : vector<256xf32> to vector<1x256xf32>
    %75 = vector.broadcast %74 : vector<1x256xf32> to vector<8x256xf32>
    %76 = arith.mulf %71, %75 : vector<8x256xf32>
    %77 = arith.truncf %76 : vector<8x256xf32> to vector<8x256xbf16>
    %c24 = arith.constant 24 : index
    %c0_63 = arith.constant 0 : index
    %78 = vector.load %arg12[%c24, %c0_63] : memref<72x256xbf16, #tpu.memory_space<vmem>>, vector<8x256xbf16>
    tpu.vector_store %arg12[%c24, %c0_63], %77 {strides = array<i32>} : memref<72x256xbf16, #tpu.memory_space<vmem>>, vector<8x256xbf16>,
    %c4_64 = arith.constant 4 : index
    %c0_65 = arith.constant 0 : index
    %79 = vector.load %arg8[%c4_64, %c0_65] : memref<9x256xf32, #tpu.memory_space<vmem>>, vector<1x256xf32>
    %80 = vector.shape_cast %79 : vector<1x256xf32> to vector<256xf32>
    %81 = vector.shape_cast %80 : vector<256xf32> to vector<1x256xf32>
    %82 = vector.broadcast %81 : vector<1x256xf32> to vector<8x256xf32>
    %83 = arith.mulf %46, %82 : vector<8x256xf32>
    %84 = arith.truncf %83 : vector<8x256xf32> to vector<8x256xbf16>
    %c32 = arith.constant 32 : index
    %c0_66 = arith.constant 0 : index
    %85 = vector.load %arg12[%c32, %c0_66] : memref<72x256xbf16, #tpu.memory_space<vmem>>, vector<8x256xbf16>
    tpu.vector_store %arg12[%c32, %c0_66], %84 {strides = array<i32>} : memref<72x256xbf16, #tpu.memory_space<vmem>>, vector<8x256xbf16>,
    %c255_i32 = arith.constant 255 : i32
    %86 = tpu.dynamic_rotate %46 by %c255_i32 dim 1 : vector<8x256xf32>, i32 -> vector<8x256xf32>
    %c5 = arith.constant 5 : index
    %c0_67 = arith.constant 0 : index
    %87 = vector.load %arg8[%c5, %c0_67] : memref<9x256xf32, #tpu.memory_space<vmem>>, vector<1x256xf32>
    %88 = vector.shape_cast %87 : vector<1x256xf32> to vector<256xf32>
    %89 = vector.shape_cast %88 : vector<256xf32> to vector<1x256xf32>
    %90 = vector.broadcast %89 : vector<1x256xf32> to vector<8x256xf32>
    %91 = arith.mulf %86, %90 : vector<8x256xf32>
    %92 = arith.truncf %91 : vector<8x256xf32> to vector<8x256xbf16>
    %c40 = arith.constant 40 : index
    %c0_68 = arith.constant 0 : index
    %93 = vector.load %arg12[%c40, %c0_68] : memref<72x256xbf16, #tpu.memory_space<vmem>>, vector<8x256xbf16>
    tpu.vector_store %arg12[%c40, %c0_68], %92 {strides = array<i32>} : memref<72x256xbf16, #tpu.memory_space<vmem>>, vector<8x256xbf16>,
    %c241_i32 = arith.constant 241 : i32
    %94 = tpu.dynamic_rotate %46 by %c241_i32 dim 1 : vector<8x256xf32>, i32 -> vector<8x256xf32>
    %c6 = arith.constant 6 : index
    %c0_69 = arith.constant 0 : index
    %95 = vector.load %arg8[%c6, %c0_69] : memref<9x256xf32, #tpu.memory_space<vmem>>, vector<1x256xf32>
    %96 = vector.shape_cast %95 : vector<1x256xf32> to vector<256xf32>
    %97 = vector.shape_cast %96 : vector<256xf32> to vector<1x256xf32>
    %98 = vector.broadcast %97 : vector<1x256xf32> to vector<8x256xf32>
    %99 = arith.mulf %94, %98 : vector<8x256xf32>
    %100 = arith.truncf %99 : vector<8x256xf32> to vector<8x256xbf16>
    %c48 = arith.constant 48 : index
    %c0_70 = arith.constant 0 : index
    %101 = vector.load %arg12[%c48, %c0_70] : memref<72x256xbf16, #tpu.memory_space<vmem>>, vector<8x256xbf16>
    tpu.vector_store %arg12[%c48, %c0_70], %100 {strides = array<i32>} : memref<72x256xbf16, #tpu.memory_space<vmem>>, vector<8x256xbf16>,
    %c240_i32 = arith.constant 240 : i32
    %102 = tpu.dynamic_rotate %46 by %c240_i32 dim 1 : vector<8x256xf32>, i32 -> vector<8x256xf32>
    %c7 = arith.constant 7 : index
    %c0_71 = arith.constant 0 : index
    %103 = vector.load %arg8[%c7, %c0_71] : memref<9x256xf32, #tpu.memory_space<vmem>>, vector<1x256xf32>
    %104 = vector.shape_cast %103 : vector<1x256xf32> to vector<256xf32>
    %105 = vector.shape_cast %104 : vector<256xf32> to vector<1x256xf32>
    %106 = vector.broadcast %105 : vector<1x256xf32> to vector<8x256xf32>
    %107 = arith.mulf %102, %106 : vector<8x256xf32>
    %108 = arith.truncf %107 : vector<8x256xf32> to vector<8x256xbf16>
    %c56 = arith.constant 56 : index
    %c0_72 = arith.constant 0 : index
    %109 = vector.load %arg12[%c56, %c0_72] : memref<72x256xbf16, #tpu.memory_space<vmem>>, vector<8x256xbf16>
    tpu.vector_store %arg12[%c56, %c0_72], %108 {strides = array<i32>} : memref<72x256xbf16, #tpu.memory_space<vmem>>, vector<8x256xbf16>,
    %c239_i32 = arith.constant 239 : i32
    %110 = tpu.dynamic_rotate %46 by %c239_i32 dim 1 : vector<8x256xf32>, i32 -> vector<8x256xf32>
    %c8_73 = arith.constant 8 : index
    %c0_74 = arith.constant 0 : index
    %111 = vector.load %arg8[%c8_73, %c0_74] : memref<9x256xf32, #tpu.memory_space<vmem>>, vector<1x256xf32>
    %112 = vector.shape_cast %111 : vector<1x256xf32> to vector<256xf32>
    %113 = vector.shape_cast %112 : vector<256xf32> to vector<1x256xf32>
    %114 = vector.broadcast %113 : vector<1x256xf32> to vector<8x256xf32>
    %115 = arith.mulf %110, %114 : vector<8x256xf32>
    %116 = arith.truncf %115 : vector<8x256xf32> to vector<8x256xbf16>
    %c64 = arith.constant 64 : index
    %c0_75 = arith.constant 0 : index
    %117 = vector.load %arg12[%c64, %c0_75] : memref<72x256xbf16, #tpu.memory_space<vmem>>, vector<8x256xbf16>
    tpu.vector_store %arg12[%c64, %c0_75], %116 {strides = array<i32>} : memref<72x256xbf16, #tpu.memory_space<vmem>>, vector<8x256xbf16>,
    %c0_76 = arith.constant 0 : index
    %c0_77 = arith.constant 0 : index
    %118 = vector.load %arg5[%c0_76, %c0_77] : memref<4x72xbf16, #tpu.memory_space<vmem>>, vector<4x72xbf16>
    %c0_78 = arith.constant 0 : index
    %c0_79 = arith.constant 0 : index
    %119 = vector.load %arg12[%c0_78, %c0_79] : memref<72x256xbf16, #tpu.memory_space<vmem>>, vector<72x256xbf16>
    %cst_80 = arith.constant dense<0.000000e+00> : vector<4x256xf32>
    %120 = tpu.matmul %118, %119, %cst_80 {dimension_numbers = #tpu.dot_dimension_numbers<[1], [0], [0], [1], [0, 0, 1, 1], [], []>} : vector<4x72xbf16>, vector<72x256xbf16>, vector<4x256xf32> -> vector<4x256xf32>
    %c1_81 = arith.constant 1 : index
    %c0_82 = arith.constant 0 : index
    %c0_83 = arith.constant 0 : index
    %121 = vector.load %arg9[%c1_81, %c0_82, %c0_83] : memref<10x4x1xf32, #tpu.memory_space<vmem>>, vector<1x4x1xf32>
    %122 = vector.shape_cast %121 : vector<1x4x1xf32> to vector<4x1xf32>
    %123 = vector.broadcast %122 : vector<4x1xf32> to vector<4x256xf32>
    %124 = arith.addf %120, %123 : vector<4x256xf32>
    %cst_84 = arith.constant 0.000000e+00 : f32
    %125 = vector.broadcast %cst_84 : f32 to vector<4x256xf32>
    %126 = arith.maximumf %124, %125 : vector<4x256xf32>
    %c2_85 = arith.constant 2 : index
    %c0_86 = arith.constant 0 : index
    %c0_87 = arith.constant 0 : index
    %127 = vector.load %arg9[%c2_85, %c0_86, %c0_87] : memref<10x4x1xf32, #tpu.memory_space<vmem>>, vector<1x4x1xf32>
    %128 = vector.shape_cast %127 : vector<1x4x1xf32> to vector<4x1xf32>
    %129 = vector.broadcast %128 : vector<4x1xf32> to vector<4x256xf32>
    %130 = arith.mulf %126, %129 : vector<4x256xf32>
    %c3_88 = arith.constant 3 : index
    %c0_89 = arith.constant 0 : index
    %c0_90 = arith.constant 0 : index
    %131 = vector.load %arg9[%c3_88, %c0_89, %c0_90] : memref<10x4x1xf32, #tpu.memory_space<vmem>>, vector<1x4x1xf32>
    %132 = vector.shape_cast %131 : vector<1x4x1xf32> to vector<4x1xf32>
    %133 = vector.broadcast %132 : vector<4x1xf32> to vector<4x256xf32>
    %134 = arith.addf %130, %133 : vector<4x256xf32>
    %c17_i32_91 = arith.constant 17 : i32
    %135 = tpu.dynamic_rotate %134 by %c17_i32_91 dim 1 : vector<4x256xf32>, i32 -> vector<4x256xf32>
    %c0_92 = arith.constant 0 : index
    %c0_93 = arith.constant 0 : index
    %136 = vector.load %arg8[%c0_92, %c0_93] : memref<9x256xf32, #tpu.memory_space<vmem>>, vector<1x256xf32>
    %137 = vector.shape_cast %136 : vector<1x256xf32> to vector<256xf32>
    %138 = vector.shape_cast %137 : vector<256xf32> to vector<1x256xf32>
    %139 = vector.broadcast %138 : vector<1x256xf32> to vector<4x256xf32>
    %140 = arith.mulf %135, %139 : vector<4x256xf32>
    %141 = arith.truncf %140 : vector<4x256xf32> to vector<4x256xbf16>
    %c0_94 = arith.constant 0 : index
    %c0_95 = arith.constant 0 : index
    %142 = vector.load %arg12[%c0_94, %c0_95] : memref<72x256xbf16, #tpu.memory_space<vmem>>, vector<4x256xbf16>
    tpu.vector_store %arg12[%c0_94, %c0_95], %141 {strides = array<i32>} : memref<72x256xbf16, #tpu.memory_space<vmem>>, vector<4x256xbf16>,
    %c16_i32_96 = arith.constant 16 : i32
    %143 = tpu.dynamic_rotate %134 by %c16_i32_96 dim 1 : vector<4x256xf32>, i32 -> vector<4x256xf32>
    %c1_97 = arith.constant 1 : index
    %c0_98 = arith.constant 0 : index
    %144 = vector.load %arg8[%c1_97, %c0_98] : memref<9x256xf32, #tpu.memory_space<vmem>>, vector<1x256xf32>
    %145 = vector.shape_cast %144 : vector<1x256xf32> to vector<256xf32>
    %146 = vector.shape_cast %145 : vector<256xf32> to vector<1x256xf32>
    %147 = vector.broadcast %146 : vector<1x256xf32> to vector<4x256xf32>
    %148 = arith.mulf %143, %147 : vector<4x256xf32>
    %149 = arith.truncf %148 : vector<4x256xf32> to vector<4x256xbf16>
    %c8_99 = arith.constant 8 : index
    %c0_100 = arith.constant 0 : index
    %150 = vector.load %arg12[%c8_99, %c0_100] : memref<72x256xbf16, #tpu.memory_space<vmem>>, vector<4x256xbf16>
    tpu.vector_store %arg12[%c8_99, %c0_100], %149 {strides = array<i32>} : memref<72x256xbf16, #tpu.memory_space<vmem>>, vector<4x256xbf16>,
    %c15_i32_101 = arith.constant 15 : i32
    %151 = tpu.dynamic_rotate %134 by %c15_i32_101 dim 1 : vector<4x256xf32>, i32 -> vector<4x256xf32>
    %c2_102 = arith.constant 2 : index
    %c0_103 = arith.constant 0 : index
    %152 = vector.load %arg8[%c2_102, %c0_103] : memref<9x256xf32, #tpu.memory_space<vmem>>, vector<1x256xf32>
    %153 = vector.shape_cast %152 : vector<1x256xf32> to vector<256xf32>
    %154 = vector.shape_cast %153 : vector<256xf32> to vector<1x256xf32>
    %155 = vector.broadcast %154 : vector<1x256xf32> to vector<4x256xf32>
    %156 = arith.mulf %151, %155 : vector<4x256xf32>
    %157 = arith.truncf %156 : vector<4x256xf32> to vector<4x256xbf16>
    %c16_104 = arith.constant 16 : index
    %c0_105 = arith.constant 0 : index
    %158 = vector.load %arg12[%c16_104, %c0_105] : memref<72x256xbf16, #tpu.memory_space<vmem>>, vector<4x256xbf16>
    tpu.vector_store %arg12[%c16_104, %c0_105], %157 {strides = array<i32>} : memref<72x256xbf16, #tpu.memory_space<vmem>>, vector<4x256xbf16>,
    %c1_i32_106 = arith.constant 1 : i32
    %159 = tpu.dynamic_rotate %134 by %c1_i32_106 dim 1 : vector<4x256xf32>, i32 -> vector<4x256xf32>
    %c3_107 = arith.constant 3 : index
    %c0_108 = arith.constant 0 : index
    %160 = vector.load %arg8[%c3_107, %c0_108] : memref<9x256xf32, #tpu.memory_space<vmem>>, vector<1x256xf32>
    %161 = vector.shape_cast %160 : vector<1x256xf32> to vector<256xf32>
    %162 = vector.shape_cast %161 : vector<256xf32> to vector<1x256xf32>
    %163 = vector.broadcast %162 : vector<1x256xf32> to vector<4x256xf32>
    %164 = arith.mulf %159, %163 : vector<4x256xf32>
    %165 = arith.truncf %164 : vector<4x256xf32> to vector<4x256xbf16>
    %c24_109 = arith.constant 24 : index
    %c0_110 = arith.constant 0 : index
    %166 = vector.load %arg12[%c24_109, %c0_110] : memref<72x256xbf16, #tpu.memory_space<vmem>>, vector<4x256xbf16>
    tpu.vector_store %arg12[%c24_109, %c0_110], %165 {strides = array<i32>} : memref<72x256xbf16, #tpu.memory_space<vmem>>, vector<4x256xbf16>,
    %c4_111 = arith.constant 4 : index
    %c0_112 = arith.constant 0 : index
    %167 = vector.load %arg8[%c4_111, %c0_112] : memref<9x256xf32, #tpu.memory_space<vmem>>, vector<1x256xf32>
    %168 = vector.shape_cast %167 : vector<1x256xf32> to vector<256xf32>
    %169 = vector.shape_cast %168 : vector<256xf32> to vector<1x256xf32>
    %170 = vector.broadcast %169 : vector<1x256xf32> to vector<4x256xf32>
    %171 = arith.mulf %134, %170 : vector<4x256xf32>
    %172 = arith.truncf %171 : vector<4x256xf32> to vector<4x256xbf16>
    %c32_113 = arith.constant 32 : index
    %c0_114 = arith.constant 0 : index
    %173 = vector.load %arg12[%c32_113, %c0_114] : memref<72x256xbf16, #tpu.memory_space<vmem>>, vector<4x256xbf16>
    tpu.vector_store %arg12[%c32_113, %c0_114], %172 {strides = array<i32>} : memref<72x256xbf16, #tpu.memory_space<vmem>>, vector<4x256xbf16>,
    %c255_i32_115 = arith.constant 255 : i32
    %174 = tpu.dynamic_rotate %134 by %c255_i32_115 dim 1 : vector<4x256xf32>, i32 -> vector<4x256xf32>
    %c5_116 = arith.constant 5 : index
    %c0_117 = arith.constant 0 : index
    %175 = vector.load %arg8[%c5_116, %c0_117] : memref<9x256xf32, #tpu.memory_space<vmem>>, vector<1x256xf32>
    %176 = vector.shape_cast %175 : vector<1x256xf32> to vector<256xf32>
    %177 = vector.shape_cast %176 : vector<256xf32> to vector<1x256xf32>
    %178 = vector.broadcast %177 : vector<1x256xf32> to vector<4x256xf32>
    %179 = arith.mulf %174, %178 : vector<4x256xf32>
    %180 = arith.truncf %179 : vector<4x256xf32> to vector<4x256xbf16>
    %c40_118 = arith.constant 40 : index
    %c0_119 = arith.constant 0 : index
    %181 = vector.load %arg12[%c40_118, %c0_119] : memref<72x256xbf16, #tpu.memory_space<vmem>>, vector<4x256xbf16>
    tpu.vector_store %arg12[%c40_118, %c0_119], %180 {strides = array<i32>} : memref<72x256xbf16, #tpu.memory_space<vmem>>, vector<4x256xbf16>,
    %c241_i32_120 = arith.constant 241 : i32
    %182 = tpu.dynamic_rotate %134 by %c241_i32_120 dim 1 : vector<4x256xf32>, i32 -> vector<4x256xf32>
    %c6_121 = arith.constant 6 : index
    %c0_122 = arith.constant 0 : index
    %183 = vector.load %arg8[%c6_121, %c0_122] : memref<9x256xf32, #tpu.memory_space<vmem>>, vector<1x256xf32>
    %184 = vector.shape_cast %183 : vector<1x256xf32> to vector<256xf32>
    %185 = vector.shape_cast %184 : vector<256xf32> to vector<1x256xf32>
    %186 = vector.broadcast %185 : vector<1x256xf32> to vector<4x256xf32>
    %187 = arith.mulf %182, %186 : vector<4x256xf32>
    %188 = arith.truncf %187 : vector<4x256xf32> to vector<4x256xbf16>
    %c48_123 = arith.constant 48 : index
    %c0_124 = arith.constant 0 : index
    %189 = vector.load %arg12[%c48_123, %c0_124] : memref<72x256xbf16, #tpu.memory_space<vmem>>, vector<4x256xbf16>
    tpu.vector_store %arg12[%c48_123, %c0_124], %188 {strides = array<i32>} : memref<72x256xbf16, #tpu.memory_space<vmem>>, vector<4x256xbf16>,
    %c240_i32_125 = arith.constant 240 : i32
    %190 = tpu.dynamic_rotate %134 by %c240_i32_125 dim 1 : vector<4x256xf32>, i32 -> vector<4x256xf32>
    %c7_126 = arith.constant 7 : index
    %c0_127 = arith.constant 0 : index
    %191 = vector.load %arg8[%c7_126, %c0_127] : memref<9x256xf32, #tpu.memory_space<vmem>>, vector<1x256xf32>
    %192 = vector.shape_cast %191 : vector<1x256xf32> to vector<256xf32>
    %193 = vector.shape_cast %192 : vector<256xf32> to vector<1x256xf32>
    %194 = vector.broadcast %193 : vector<1x256xf32> to vector<4x256xf32>
    %195 = arith.mulf %190, %194 : vector<4x256xf32>
    %196 = arith.truncf %195 : vector<4x256xf32> to vector<4x256xbf16>
    %c56_128 = arith.constant 56 : index
    %c0_129 = arith.constant 0 : index
    %197 = vector.load %arg12[%c56_128, %c0_129] : memref<72x256xbf16, #tpu.memory_space<vmem>>, vector<4x256xbf16>
    tpu.vector_store %arg12[%c56_128, %c0_129], %196 {strides = array<i32>} : memref<72x256xbf16, #tpu.memory_space<vmem>>, vector<4x256xbf16>,
    %c239_i32_130 = arith.constant 239 : i32
    %198 = tpu.dynamic_rotate %134 by %c239_i32_130 dim 1 : vector<4x256xf32>, i32 -> vector<4x256xf32>
    %c8_131 = arith.constant 8 : index
    %c0_132 = arith.constant 0 : index
    %199 = vector.load %arg8[%c8_131, %c0_132] : memref<9x256xf32, #tpu.memory_space<vmem>>, vector<1x256xf32>
    %200 = vector.shape_cast %199 : vector<1x256xf32> to vector<256xf32>
    %201 = vector.shape_cast %200 : vector<256xf32> to vector<1x256xf32>
    %202 = vector.broadcast %201 : vector<1x256xf32> to vector<4x256xf32>
    %203 = arith.mulf %198, %202 : vector<4x256xf32>
    %204 = arith.truncf %203 : vector<4x256xf32> to vector<4x256xbf16>
    %c64_133 = arith.constant 64 : index
    %c0_134 = arith.constant 0 : index
    %205 = vector.load %arg12[%c64_133, %c0_134] : memref<72x256xbf16, #tpu.memory_space<vmem>>, vector<4x256xbf16>
    tpu.vector_store %arg12[%c64_133, %c0_134], %204 {strides = array<i32>} : memref<72x256xbf16, #tpu.memory_space<vmem>>, vector<4x256xbf16>,
    %c0_135 = arith.constant 0 : index
    %c0_136 = arith.constant 0 : index
    %206 = vector.load %arg6[%c0_135, %c0_136] : memref<4x72xbf16, #tpu.memory_space<vmem>>, vector<4x72xbf16>
    %c0_137 = arith.constant 0 : index
    %c0_138 = arith.constant 0 : index
    %207 = vector.load %arg12[%c0_137, %c0_138] : memref<72x256xbf16, #tpu.memory_space<vmem>>, vector<72x256xbf16>
    %cst_139 = arith.constant dense<0.000000e+00> : vector<4x256xf32>
    %208 = tpu.matmul %206, %207, %cst_139 {dimension_numbers = #tpu.dot_dimension_numbers<[1], [0], [0], [1], [0, 0, 1, 1], [], []>} : vector<4x72xbf16>, vector<72x256xbf16>, vector<4x256xf32> -> vector<4x256xf32>
    %c4_140 = arith.constant 4 : index
    %c0_141 = arith.constant 0 : index
    %c0_142 = arith.constant 0 : index
    %209 = vector.load %arg9[%c4_140, %c0_141, %c0_142] : memref<10x4x1xf32, #tpu.memory_space<vmem>>, vector<1x4x1xf32>
    %210 = vector.shape_cast %209 : vector<1x4x1xf32> to vector<4x1xf32>
    %211 = vector.broadcast %210 : vector<4x1xf32> to vector<4x256xf32>
    %212 = arith.addf %208, %211 : vector<4x256xf32>
    %cst_143 = arith.constant 0.000000e+00 : f32
    %213 = vector.broadcast %cst_143 : f32 to vector<4x256xf32>
    %214 = arith.maximumf %212, %213 : vector<4x256xf32>
    %c5_144 = arith.constant 5 : index
    %c0_145 = arith.constant 0 : index
    %c0_146 = arith.constant 0 : index
    %215 = vector.load %arg9[%c5_144, %c0_145, %c0_146] : memref<10x4x1xf32, #tpu.memory_space<vmem>>, vector<1x4x1xf32>
    %216 = vector.shape_cast %215 : vector<1x4x1xf32> to vector<4x1xf32>
    %217 = vector.broadcast %216 : vector<4x1xf32> to vector<4x256xf32>
    %218 = arith.mulf %214, %217 : vector<4x256xf32>
    %c6_147 = arith.constant 6 : index
    %c0_148 = arith.constant 0 : index
    %c0_149 = arith.constant 0 : index
    %219 = vector.load %arg9[%c6_147, %c0_148, %c0_149] : memref<10x4x1xf32, #tpu.memory_space<vmem>>, vector<1x4x1xf32>
    %220 = vector.shape_cast %219 : vector<1x4x1xf32> to vector<4x1xf32>
    %221 = vector.broadcast %220 : vector<4x1xf32> to vector<4x256xf32>
    %222 = arith.addf %218, %221 : vector<4x256xf32>
    %c0_150 = arith.constant 0 : index
    %c0_151 = arith.constant 0 : index
    %223 = vector.load %arg7[%c0_150, %c0_151] : memref<4x8xbf16, #tpu.memory_space<vmem>>, vector<4x8xbf16>
    %224 = arith.truncf %46 : vector<8x256xf32> to vector<8x256xbf16>
    %cst_152 = arith.constant dense<0.000000e+00> : vector<4x256xf32>
    %225 = tpu.matmul %223, %224, %cst_152 {dimension_numbers = #tpu.dot_dimension_numbers<[1], [0], [0], [1], [0, 0, 1, 1], [], []>} : vector<4x8xbf16>, vector<8x256xbf16>, vector<4x256xf32> -> vector<4x256xf32>
    %c7_153 = arith.constant 7 : index
    %c0_154 = arith.constant 0 : index
    %c0_155 = arith.constant 0 : index
    %226 = vector.load %arg9[%c7_153, %c0_154, %c0_155] : memref<10x4x1xf32, #tpu.memory_space<vmem>>, vector<1x4x1xf32>
    %227 = vector.shape_cast %226 : vector<1x4x1xf32> to vector<4x1xf32>
    %228 = vector.broadcast %227 : vector<4x1xf32> to vector<4x256xf32>
    %229 = arith.addf %225, %228 : vector<4x256xf32>
    %c8_156 = arith.constant 8 : index
    %c0_157 = arith.constant 0 : index
    %c0_158 = arith.constant 0 : index
    %230 = vector.load %arg9[%c8_156, %c0_157, %c0_158] : memref<10x4x1xf32, #tpu.memory_space<vmem>>, vector<1x4x1xf32>
    %231 = vector.shape_cast %230 : vector<1x4x1xf32> to vector<4x1xf32>
    %232 = vector.broadcast %231 : vector<4x1xf32> to vector<4x256xf32>
    %233 = arith.mulf %229, %232 : vector<4x256xf32>
    %c9 = arith.constant 9 : index
    %c0_159 = arith.constant 0 : index
    %c0_160 = arith.constant 0 : index
    %234 = vector.load %arg9[%c9, %c0_159, %c0_160] : memref<10x4x1xf32, #tpu.memory_space<vmem>>, vector<1x4x1xf32>
    %235 = vector.shape_cast %234 : vector<1x4x1xf32> to vector<4x1xf32>
    %236 = vector.broadcast %235 : vector<4x1xf32> to vector<4x256xf32>
    %237 = arith.addf %233, %236 : vector<4x256xf32>
    %238 = arith.addf %222, %237 : vector<4x256xf32>
    %c0_161 = arith.constant 0 : index
    %c0_162 = arith.constant 0 : index
    %c0_163 = arith.constant 0 : index
    %239 = vector.load %arg10[%c0_161, %c0_162, %c0_163] : memref<1x4x256xf32, #tpu.memory_space<vmem>>, vector<1x4x256xf32>
    %240 = vector.shape_cast %239 : vector<1x4x256xf32> to vector<4x256xf32>
    %241 = vector.shape_cast %238 : vector<4x256xf32> to vector<1x4x256xf32>
    tpu.vector_store %arg10[%c0_161, %c0_162, %c0_163], %241 {strides = array<i32>} : memref<1x4x256xf32, #tpu.memory_space<vmem>>, vector<1x4x256xf32>,
    return
  }
  func.func @transform_0(%arg0: i32) -> (i32, i32, i32) {
    %c0_i32 = arith.constant 0 : i32
    %c0_i32_0 = arith.constant 0 : i32
    %c0_i32_1 = arith.constant 0 : i32
    return %arg0, %c0_i32, %c0_i32_0 : i32, i32, i32
  }
  func.func @transform_1(%arg0: i32) -> (i32, i32, i32) {
    %c0_i32 = arith.constant 0 : i32
    %c0_i32_0 = arith.constant 0 : i32
    %c0_i32_1 = arith.constant 0 : i32
    return %arg0, %c0_i32, %c0_i32_0 : i32, i32, i32
  }
  func.func @transform_2(%arg0: i32) -> (i32, i32, i32) {
    %c0_i32 = arith.constant 0 : i32
    %c0_i32_0 = arith.constant 0 : i32
    %c0_i32_1 = arith.constant 0 : i32
    %c0_i32_2 = arith.constant 0 : i32
    return %c0_i32, %c0_i32_0, %c0_i32_1 : i32, i32, i32
  }
  func.func @transform_3(%arg0: i32) -> (i32, i32, i32) {
    %c0_i32 = arith.constant 0 : i32
    %c0_i32_0 = arith.constant 0 : i32
    %c0_i32_1 = arith.constant 0 : i32
    %c0_i32_2 = arith.constant 0 : i32
    return %c0_i32, %c0_i32_0, %c0_i32_1 : i32, i32, i32
  }
  func.func @transform_4(%arg0: i32) -> (i32, i32) {
    %c0_i32 = arith.constant 0 : i32
    %c0_i32_0 = arith.constant 0 : i32
    %c0_i32_1 = arith.constant 0 : i32
    return %c0_i32, %c0_i32_0 : i32, i32
  }
  func.func @transform_5(%arg0: i32) -> (i32, i32) {
    %c0_i32 = arith.constant 0 : i32
    %c0_i32_0 = arith.constant 0 : i32
    %c0_i32_1 = arith.constant 0 : i32
    return %c0_i32, %c0_i32_0 : i32, i32
  }
  func.func @transform_6(%arg0: i32) -> (i32, i32) {
    %c0_i32 = arith.constant 0 : i32
    %c0_i32_0 = arith.constant 0 : i32
    %c0_i32_1 = arith.constant 0 : i32
    return %c0_i32, %c0_i32_0 : i32, i32
  }
  func.func @transform_7(%arg0: i32) -> (i32, i32) {
    %c0_i32 = arith.constant 0 : i32
    %c0_i32_0 = arith.constant 0 : i32
    %c0_i32_1 = arith.constant 0 : i32
    return %c0_i32, %c0_i32_0 : i32, i32
  }
  func.func @transform_8(%arg0: i32) -> (i32, i32, i32) {
    %c0_i32 = arith.constant 0 : i32
    %c0_i32_0 = arith.constant 0 : i32
    %c0_i32_1 = arith.constant 0 : i32
    %c0_i32_2 = arith.constant 0 : i32
    return %c0_i32, %c0_i32_0, %c0_i32_1 : i32, i32, i32
  }
  func.func @transform_9(%arg0: i32) -> (i32, i32, i32) {
    %c0_i32 = arith.constant 0 : i32
    %c0_i32_0 = arith.constant 0 : i32
    %c0_i32_1 = arith.constant 0 : i32
    return %arg0, %c0_i32, %c0_i32_0 : i32, i32, i32
  }
}

</mosaic_0001>

<llo_original>
// kernel: decoder_block_forward.1
$region0: #{decoder_block_forward.1}
  #allocation0 [shape = 'u32[]', space=smem, size = 0x4, offset = 0x4, fixed_abs, tag = 'smem constant byte address 0x4 - core index']
  #allocation1 [shape = 'u32[144,128]{1,0:T(1,128)}', space=vmem, size = 0x12000, scoped, tag = 'internal scratch']
  #allocation2 [shape = 'f32[8,256]{1,0:T(8,128)}', space=vmem, size = 0x2000, scoped, tag = 'scratch operand']
  #allocation3 [shape = 'bf16[72,256]{1,0:T(8,128)(2,1)}', space=vmem, size = 0x9000, scoped, tag = 'scratch operand']
  %s0 = inlined_call_operand.vmem [shape: bf16[2,8,64], index: 0, kind: input, shape index: {}]
  %s1 = inlined_call_operand.vmem [shape: bf16[2,4,256], index: 1, kind: input, shape index: {}]
  %s2 = inlined_call_operand.vmem [shape: f32[4,64,256], index: 2, kind: input, shape index: {}]
  %s3 = inlined_call_operand.vmem [shape: bf16[4,4,8], index: 3, kind: input, shape index: {}]
  %s4 = inlined_call_operand.vmem [shape: bf16[4,72], index: 4, kind: input, shape index: {}]
  %s5 = inlined_call_operand.vmem [shape: bf16[4,72], index: 5, kind: input, shape index: {}]
  %s6 = inlined_call_operand.vmem [shape: bf16[4,8], index: 6, kind: input, shape index: {}]
  %s7 = inlined_call_operand.vmem [shape: f32[9,256], index: 7, kind: input, shape index: {}]
  %s8 = inlined_call_operand.vmem [shape: f32[10,4,1], index: 8, kind: input, shape index: {}]
  %s9 = inlined_call_operand.vmem [shape: f32[2,4,256], index: 9, kind: output, shape index: {}]
  %s10 = sld [smem:[#allocation0]]
  $region69: #{decoder_block_forward.1} parent=0
    _
  %s12 = ssub.s32 1, %s10
  %s13 = scalar_select 0, %s12, %s10
  loop: start=0, step=1, limit=4
  $region2: #{decoder_block_forward.1} parent=0 // loop_pre_header
    _
  $region3: #{decoder_block_forward.1} parent=0 // loop_header
    %s15 = sphi 0, %s19
    %p16 = scmp.ge.s32.totalorder %s15, 4
    %s25 = sphi 0, %s27
    %s28 = sphi 0, %s25
    %s29 = sphi 0, %s28
    %s45 = sphi 0, %s29
    %s51 = sphi 0, %s53
    %s54 = sphi 0, %s51
    %s55 = sphi 0, %s54
    %s71 = sphi 0, %s55
    %s75 = sphi 0, %s75
    %s77 = sphi 0, %s75
    %s78 = sphi 0, %s77
    %s92 = sphi 0, %s78
    %s96 = sphi 0, %s96
    %s98 = sphi 0, %s96
    %s99 = sphi 0, %s98
    %s113 = sphi 0, %s99
    %s117 = sphi 0, %s117
    %s119 = sphi 0, %s117
    %s120 = sphi 0, %s119
    %s134 = sphi 0, %s120
    %s138 = sphi 0, %s138
    %s140 = sphi 0, %s138
    %s141 = sphi 0, %s140
    %s155 = sphi 0, %s141
    %s159 = sphi 0, %s159
    %s161 = sphi 0, %s159
    %s162 = sphi 0, %s161
    %s176 = sphi 0, %s162
    %s180 = sphi 0, %s180
    %s182 = sphi 0, %s180
    %s183 = sphi 0, %s182
    %s197 = sphi 0, %s183
    %s201 = sphi 0, %s201
    %s203 = sphi 0, %s201
    %s204 = sphi 0, %s203
    %s218 = sphi 0, %s204
    %s224 = sphi 0, %s226
    %s227 = sphi 0, %s224
    %s228 = sphi 0, %s227
    %s244 = sphi 0, %s228
  $region4: #{decoder_block_forward.1} parent=0 // loop_header_branch
    %18 = sbr.rel (%p16) target = $region8
  $region5: #{decoder_block_forward.1} parent=0 // loop_body
    %s20 = ssub.s32 %s15, 1
    %s21 = ssub.s32 %s15, 2
    %s22 = sadd.s32 %s15, 1
    %s23 = ssub.s32 %s15, %s22
    %p24 = scmp.eq.s32.totalorder %s23, 0
    %s26 = sadd.s32 %s25, 1
    %s27 = scalar_select %p24, %s25, %s26
    %p30 = pneg %p24
    %p31 = scmp.eq.s32.totalorder %s15, 1
    %p32 = por %p30, %p31
    %p33 = scmp.ne.s32.totalorder %s25, %s28
    %p34 = scmp.eq.s32.totalorder %s15, 0
    %p35 = por %p33, %p34
    %p36 = scmp.ne.s32.totalorder %s25, %s28
    %p37 = scmp.eq.s32.totalorder %s20, 1
    %p38 = por %p36, %p37
    %p39 = scmp.ne.s32.totalorder %s28, %s29
    %p40 = scmp.eq.s32.totalorder %s20, 0
    %p41 = por %p39, %p40
    %p42 = scmp.ne.s32.totalorder %s28, %s29
    %p43 = scmp.eq.s32.totalorder %s21, 1
    %p44 = por %p42, %p43
    %p46 = scmp.ne.s32.totalorder %s29, %s45
    %p47 = scmp.eq.s32.totalorder %s21, 0
    %p48 = por %p46, %p47
    %s49 = ssub.s32 %s15, %s22
    %p50 = scmp.eq.s32.totalorder %s49, 0
    %s52 = sadd.s32 %s51, 1
    %s53 = scalar_select %p50, %s51, %s52
    %p56 = pneg %p50
    %p57 = scmp.eq.s32.totalorder %s15, 1
    %p58 = por %p56, %p57
    %p59 = scmp.ne.s32.totalorder %s51, %s54
    %p60 = scmp.eq.s32.totalorder %s15, 0
    %p61 = por %p59, %p60
    %p62 = scmp.ne.s32.totalorder %s51, %s54
    %p63 = scmp.eq.s32.totalorder %s20, 1
    %p64 = por %p62, %p63
    %p65 = scmp.ne.s32.totalorder %s54, %s55
    %p66 = scmp.eq.s32.totalorder %s20, 0
    %p67 = por %p65, %p66
    %p68 = scmp.ne.s32.totalorder %s54, %s55
    %p69 = scmp.eq.s32.totalorder %s21, 1
    %p70 = por %p68, %p69
    %p72 = scmp.ne.s32.totalorder %s55, %s71
    %p73 = scmp.eq.s32.totalorder %s21, 0
    %p74 = por %p72, %p73
    %s76 = sadd.s32 %s75, 1
    %p79 = scmp.eq.s32.totalorder %s15, 1
    %p80 = scmp.ne.s32.totalorder %s75, %s77
    %p81 = scmp.eq.s32.totalorder %s15, 0
    %p82 = por %p80, %p81
    %p83 = scmp.ne.s32.totalorder %s75, %s77
    %p84 = scmp.eq.s32.totalorder %s20, 1
    %p85 = por %p83, %p84
    %p86 = scmp.ne.s32.totalorder %s77, %s78
    %p87 = scmp.eq.s32.totalorder %s20, 0
    %p88 = por %p86, %p87
    %p89 = scmp.ne.s32.totalorder %s77, %s78
    %p90 = scmp.eq.s32.totalorder %s21, 1
    %p91 = por %p89, %p90
    %p93 = scmp.ne.s32.totalorder %s78, %s92
    %p94 = scmp.eq.s32.totalorder %s21, 0
    %p95 = por %p93, %p94
    %s97 = sadd.s32 %s96, 1
    %p100 = scmp.eq.s32.totalorder %s15, 1
    %p101 = scmp.ne.s32.totalorder %s96, %s98
    %p102 = scmp.eq.s32.totalorder %s15, 0
    %p103 = por %p101, %p102
    %p104 = scmp.ne.s32.totalorder %s96, %s98
    %p105 = scmp.eq.s32.totalorder %s20, 1
    %p106 = por %p104, %p105
    %p107 = scmp.ne.s32.totalorder %s98, %s99
    %p108 = scmp.eq.s32.totalorder %s20, 0
    %p109 = por %p107, %p108
    %p110 = scmp.ne.s32.totalorder %s98, %s99
    %p111 = scmp.eq.s32.totalorder %s21, 1
    %p112 = por %p110, %p111
    %p114 = scmp.ne.s32.totalorder %s99, %s113
    %p115 = scmp.eq.s32.totalorder %s21, 0
    %p116 = por %p114, %p115
    %s118 = sadd.s32 %s117, 1
    %p121 = scmp.eq.s32.totalorder %s15, 1
    %p122 = scmp.ne.s32.totalorder %s117, %s119
    %p123 = scmp.eq.s32.totalorder %s15, 0
    %p124 = por %p122, %p123
    %p125 = scmp.ne.s32.totalorder %s117, %s119
    %p126 = scmp.eq.s32.totalorder %s20, 1
    %p127 = por %p125, %p126
    %p128 = scmp.ne.s32.totalorder %s119, %s120
    %p129 = scmp.eq.s32.totalorder %s20, 0
    %p130 = por %p128, %p129
    %p131 = scmp.ne.s32.totalorder %s119, %s120
    %p132 = scmp.eq.s32.totalorder %s21, 1
    %p133 = por %p131, %p132
    %p135 = scmp.ne.s32.totalorder %s120, %s134
    %p136 = scmp.eq.s32.totalorder %s21, 0
    %p137 = por %p135, %p136
    %s139 = sadd.s32 %s138, 1
    %p142 = scmp.eq.s32.totalorder %s15, 1
    %p143 = scmp.ne.s32.totalorder %s138, %s140
    %p144 = scmp.eq.s32.totalorder %s15, 0
    %p145 = por %p143, %p144
    %p146 = scmp.ne.s32.totalorder %s138, %s140
    %p147 = scmp.eq.s32.totalorder %s20, 1
    %p148 = por %p146, %p147
    %p149 = scmp.ne.s32.totalorder %s140, %s141
    %p150 = scmp.eq.s32.totalorder %s20, 0
    %p151 = por %p149, %p150
    %p152 = scmp.ne.s32.totalorder %s140, %s141
    %p153 = scmp.eq.s32.totalorder %s21, 1
    %p154 = por %p152, %p153
    %p156 = scmp.ne.s32.totalorder %s141, %s155
    %p157 = scmp.eq.s32.totalorder %s21, 0
    %p158 = por %p156, %p157
    %s160 = sadd.s32 %s159, 1
    %p163 = scmp.eq.s32.totalorder %s15, 1
    %p164 = scmp.ne.s32.totalorder %s159, %s161
    %p165 = scmp.eq.s32.totalorder %s15, 0
    %p166 = por %p164, %p165
    %p167 = scmp.ne.s32.totalorder %s159, %s161
    %p168 = scmp.eq.s32.totalorder %s20, 1
    %p169 = por %p167, %p168
    %p170 = scmp.ne.s32.totalorder %s161, %s162
    %p171 = scmp.eq.s32.totalorder %s20, 0
    %p172 = por %p170, %p171
    %p173 = scmp.ne.s32.totalorder %s161, %s162
    %p174 = scmp.eq.s32.totalorder %s21, 1
    %p175 = por %p173, %p174
    %p177 = scmp.ne.s32.totalorder %s162, %s176
    %p178 = scmp.eq.s32.totalorder %s21, 0
    %p179 = por %p177, %p178
    %s181 = sadd.s32 %s180, 1
    %p184 = scmp.eq.s32.totalorder %s15, 1
    %p185 = scmp.ne.s32.totalorder %s180, %s182
    %p186 = scmp.eq.s32.totalorder %s15, 0
    %p187 = por %p185, %p186
    %p188 = scmp.ne.s32.totalorder %s180, %s182
    %p189 = scmp.eq.s32.totalorder %s20, 1
    %p190 = por %p188, %p189
    %p191 = scmp.ne.s32.totalorder %s182, %s183
    %p192 = scmp.eq.s32.totalorder %s20, 0
    %p193 = por %p191, %p192
    %p194 = scmp.ne.s32.totalorder %s182, %s183
    %p195 = scmp.eq.s32.totalorder %s21, 1
    %p196 = por %p194, %p195
    %p198 = scmp.ne.s32.totalorder %s183, %s197
    %p199 = scmp.eq.s32.totalorder %s21, 0
    %p200 = por %p198, %p199
    %s202 = sadd.s32 %s201, 1
    %p205 = scmp.eq.s32.totalorder %s15, 1
    %p206 = scmp.ne.s32.totalorder %s201, %s203
    %p207 = scmp.eq.s32.totalorder %s15, 0
    %p208 = por %p206, %p207
    %p209 = scmp.ne.s32.totalorder %s201, %s203
    %p210 = scmp.eq.s32.totalorder %s20, 1
    %p211 = por %p209, %p210
    %p212 = scmp.ne.s32.totalorder %s203, %s204
    %p213 = scmp.eq.s32.totalorder %s20, 0
    %p214 = por %p212, %p213
    %p215 = scmp.ne.s32.totalorder %s203, %s204
    %p216 = scmp.eq.s32.totalorder %s21, 1
    %p217 = por %p215, %p216
    %p219 = scmp.ne.s32.totalorder %s204, %s218
    %p220 = scmp.eq.s32.totalorder %s21, 0
    %p221 = por %p219, %p220
    %s222 = ssub.s32 %s15, %s22
    %p223 = scmp.eq.s32.totalorder %s222, 0
    %s225 = sadd.s32 %s224, 1
    %s226 = scalar_select %p223, %s224, %s225
    %p229 = pneg %p223
    %p230 = scmp.eq.s32.totalorder %s15, 1
    %p231 = por %p229, %p230
    %p232 = scmp.ne.s32.totalorder %s224, %s227
    %p233 = scmp.eq.s32.totalorder %s15, 0
    %p234 = por %p232, %p233
    %p235 = scmp.ne.s32.totalorder %s224, %s227
    %p236 = scmp.eq.s32.totalorder %s20, 1
    %p237 = por %p235, %p236
    %p238 = scmp.ne.s32.totalorder %s227, %s228
    %p239 = scmp.eq.s32.totalorder %s20, 0
    %p240 = por %p238, %p239
    %p241 = scmp.ne.s32.totalorder %s227, %s228
    %p242 = scmp.eq.s32.totalorder %s21, 1
    %p243 = por %p241, %p242
    %p245 = scmp.ne.s32.totalorder %s228, %s244
    %p246 = scmp.eq.s32.totalorder %s21, 0
    %p247 = por %p245, %p246
    %p248 = scmp.le.s32.totalorder 1, %s15
    %p249 = scmp.lt.s32.totalorder %s15, 3
    %p250 = pnand %p248, %p249
    %p251 = pneg %p250
    // Predicated region
    $region9: #{decoder_block_forward.1} parent=5 // pred_check
      _
    $region10: #{decoder_block_forward.1} parent=5 // pred_check_branch
      %253 = sbr.rel (%p250) target = $region12
    $region11: #{decoder_block_forward.1} parent=5 // pred_region
      %s254 = ssub.s32 %s15, 1
      // Predicated region
      $region13: #{decoder_block_forward.1} parent=11 // pred_check
        %p255 = pneg %p88
      $region14: #{decoder_block_forward.1} parent=11 // pred_check_branch
        %257 = sbr.rel (%p255) target = $region16
      $region15: #{decoder_block_forward.1} parent=11 // pred_region
        _
      $region16: #{decoder_block_forward.1} parent=11 // pred_fallthru
        _
      // Predicated region
      $region17: #{decoder_block_forward.1} parent=11 // pred_check
        %p258 = pneg %p109
      $region18: #{decoder_block_forward.1} parent=11 // pred_check_branch
        %260 = sbr.rel (%p258) target = $region20
      $region19: #{decoder_block_forward.1} parent=11 // pred_region
        _
      $region20: #{decoder_block_forward.1} parent=11 // pred_fallthru
        _
      // Predicated region
      $region21: #{decoder_block_forward.1} parent=11 // pred_check
        %p261 = pneg %p130
      $region22: #{decoder_block_forward.1} parent=11 // pred_check_branch
        %263 = sbr.rel (%p261) target = $region24
      $region23: #{decoder_block_forward.1} parent=11 // pred_region
        _
      $region24: #{decoder_block_forward.1} parent=11 // pred_fallthru
        _
      // Predicated region
      $region25: #{decoder_block_forward.1} parent=11 // pred_check
        %p264 = pneg %p151
      $region26: #{decoder_block_forward.1} parent=11 // pred_check_branch
        %266 = sbr.rel (%p264) target = $region28
      $region27: #{decoder_block_forward.1} parent=11 // pred_region
        _
      $region28: #{decoder_block_forward.1} parent=11 // pred_fallthru
        _
      // Predicated region
      $region29: #{decoder_block_forward.1} parent=11 // pred_check
        %p267 = pneg %p172
      $region30: #{decoder_block_forward.1} parent=11 // pred_check_branch
        %269 = sbr.rel (%p267) target = $region32
      $region31: #{decoder_block_forward.1} parent=11 // pred_region
        _
      $region32: #{decoder_block_forward.1} parent=11 // pred_fallthru
        _
      // Predicated region
      $region33: #{decoder_block_forward.1} parent=11 // pred_check
        %p270 = pneg %p193
      $region34: #{decoder_block_forward.1} parent=11 // pred_check_branch
        %272 = sbr.rel (%p270) target = $region36
      $region35: #{decoder_block_forward.1} parent=11 // pred_region
        _
      $region36: #{decoder_block_forward.1} parent=11 // pred_fallthru
        _
      // Predicated region
      $region37: #{decoder_block_forward.1} parent=11 // pred_check
        %p273 = pneg %p214
      $region38: #{decoder_block_forward.1} parent=11 // pred_check_branch
        %275 = sbr.rel (%p273) target = $region40
      $region39: #{decoder_block_forward.1} parent=11 // pred_region
        _
      $region40: #{decoder_block_forward.1} parent=11 // pred_fallthru
        _
    $region12: #{decoder_block_forward.1} parent=5 // pred_fallthru
      _
    %p276 = scmp.lt.s32.totalorder %s15, 2
    // Predicated region
    $region41: #{decoder_block_forward.1} parent=5 // pred_check
      %p277 = pneg %p276
    $region42: #{decoder_block_forward.1} parent=5 // pred_check_branch
      %279 = sbr.rel (%p277) target = $region44
    $region43: #{decoder_block_forward.1} parent=5 // pred_region
      // Predicated region
      $region45: #{decoder_block_forward.1} parent=43 // pred_check
        %p280 = pneg %p35
      $region46: #{decoder_block_forward.1} parent=43 // pred_check_branch
        %282 = sbr.rel (%p280) target = $region48
      $region47: #{decoder_block_forward.1} parent=43 // pred_region
        %p283 = scmp.lt.s32.totalorder %s15, 1
        %s284 = scalar_select %p283, %s15, 1
        %s285 = smul.addr %s284, 4
        %s286 = scalar_lea.vmem %s0, %s285
      $region48: #{decoder_block_forward.1} parent=43 // pred_fallthru
        _
      // Predicated region
      $region49: #{decoder_block_forward.1} parent=43 // pred_check
        %p287 = pneg %p61
      $region50: #{decoder_block_forward.1} parent=43 // pred_check_branch
        %289 = sbr.rel (%p287) target = $region52
      $region51: #{decoder_block_forward.1} parent=43 // pred_region
        %p290 = scmp.lt.s32.totalorder %s15, 1
        %s291 = scalar_select %p290, %s15, 1
        %s292 = smul.addr %s291, 2
        %s293 = smul.addr %s292, 2
        %s294 = scalar_lea.vmem %s1, %s293
      $region52: #{decoder_block_forward.1} parent=43 // pred_fallthru
        _
    $region44: #{decoder_block_forward.1} parent=5 // pred_fallthru
      _
    %p295 = scmp.le.s32.totalorder 1, %s15
    %p296 = scmp.lt.s32.totalorder %s15, 3
    %p297 = pnand %p295, %p296
    %p298 = pneg %p297
    // Predicated region
    $region53: #{decoder_block_forward.1} parent=5 // pred_check
      _
    $region54: #{decoder_block_forward.1} parent=5 // pred_check_branch
      %300 = sbr.rel (%p297) target = $region56
    $region55: #{decoder_block_forward.1} parent=5 // pred_region
      %s301 = ssub.s32 %s15, 1
      %p302 = scmp.lt.s32.totalorder %s20, 1
      %s303 = scalar_select %p302, %s20, 1
      %s304 = smul.addr %s303, 4
      %s305 = scalar_lea.vmem %s0, %s304
      %p306 = pneg %p41
      %p307 = pneg %p38
      %p308 = scmp.lt.s32.totalorder %s20, 1
      %s309 = scalar_select %p308, %s20, 1
      %s310 = smul.addr %s309, 2
      %s311 = smul.addr %s310, 2
      %s312 = scalar_lea.vmem %s1, %s311
      %p313 = pneg %p67
      %p314 = pneg %p64
      %p315 = pneg %p88
      %p316 = pneg %p85
      %p317 = pneg %p109
      %p318 = pneg %p106
      %p319 = pneg %p130
      %p320 = pneg %p127
      %p321 = pneg %p151
      %p322 = pneg %p148
      %p323 = pneg %p172
      %p324 = pneg %p169
      %p325 = pneg %p193
      %p326 = pneg %p190
      %p327 = pneg %p214
      %p328 = pneg %p211
      %p329 = pneg %p240
      %p330 = pneg %p237
      %p331 = scmp.lt.s32.totalorder %s20, 1
      %s332 = scalar_select %p331, %s20, 1
      %s333 = smul.addr %s332, 2
      %s334 = smul.addr %s333, 4
      %s335 = scalar_lea.vmem %s9, %s334
      %p336 = scmp.lt.s32.totalorder %s20, 1
      %s337 = scalar_select %p336, %s20, 1
      %s338 = smul.addr %s337, 4
      %s339 = scalar_lea.vmem %s0, %s338
      %p340 = scmp.lt.s32.totalorder %s20, 1
      %s341 = scalar_select %p340, %s20, 1
      %s342 = smul.addr %s341, 2
      %s343 = smul.addr %s342, 2
      %s344 = scalar_lea.vmem %s1, %s343
      %p345 = scmp.lt.s32.totalorder %s20, 1
      %s346 = scalar_select %p345, %s20, 1
      %s347 = smul.addr %s346, 2
      %s348 = smul.addr %s347, 4
      %s349 = scalar_lea.vmem %s9, %s348
      %v351 = vld [vmem:[%s3] sm:$0x3]
      %v352 = vld [vmem:[%s339] sm:$0xf]
      %vm353 = vcmask 64512
      %v355 = vsel %vm353, %v351, 0
      %vm357 = vcmask 1043456
      %v359 = vsel %vm357, %v352, 0
      %361 = vmatprep.subr.bf16.mxu0 0
      %362 = vmatpush1.bf16.msra.mxu0 %v359
      %363 = vmatprep.subr.bf16.mxu0 0
      %364 = vmatpush1.bf16.msra.mxu0 0
      %365 = vmatprep.subr.bf16.mxu0 0
      %366 = vmatpush1.bf16.msra.mxu0 0
      %367 = vmatprep.subr.bf16.mxu0 0
      %368 = vmatpush1.bf16.msra.mxu0 0
      %369 = vmatprep.subr.bf16.mxu0 0
      %370 = vmatpush1.bf16.msra.mxu0 0
      %371 = vmatprep.subr.bf16.mxu0 0
      %372 = vmatpush1.bf16.msra.mxu0 0
      %373 = vmatprep.subr.bf16.mxu0 0
      %374 = vmatpush1.bf16.msra.mxu0 0
      %375 = vmatprep.subr.bf16.mxu0 0
      %376 = vmatpush1.bf16.msra.mxu0 0
      %377 = vmatprep.subr.bf16.mxu0 0
      %378 = vmatpush1.bf16.msra.mxu0 0
      %379 = vmatprep.subr.bf16.mxu0 0
      %380 = vmatpush1.bf16.msra.mxu0 0
      %381 = vmatprep.subr.bf16.mxu0 0
      %382 = vmatpush1.bf16.msra.mxu0 0
      %383 = vmatprep.subr.bf16.mxu0 0
      %384 = vmatpush1.bf16.msra.mxu0 0
      %385 = vmatprep.subr.bf16.mxu0 0
      %386 = vmatpush1.bf16.msra.mxu0 0
      %387 = vmatprep.subr.bf16.mxu0 0
      %388 = vmatpush1.bf16.msra.mxu0 0
      %389 = vmatprep.subr.bf16.mxu0 0
      %390 = vmatpush1.bf16.msra.mxu0 0
      %391 = vmatprep.subr.bf16.mxu0 0
      %392 = vmatpush1.bf16.msra.mxu0 0
      %393 = vmatprep.mubr.bf16.mxu0 0
      %394 = vmatmul.mubr.bf16.gmra.mrb[0].mxu0 %v355
      %v395 = vpop.f32.mrb[0].mxu0
      %v396 = vadd.f32 0.0, %v395
      %v397 = vpop.f32.mrb[0].mxu0
      %v398 = vpop.f32.mrb[0].mxu0
      %v399 = vpop.f32.mrb[0].mxu0
      %400 = vdwg.mxu0
      %v401 = vld [vmem:[%s2] sm:$0xff]
      %v402 = vld [vmem:[%s2 + $0x8] sm:$0xff]
      %v403 = vld [vmem:[%s2 + $0x10] sm:$0xff]
      %v404 = vld [vmem:[%s2 + $0x18] sm:$0xff]
      %v405 = vld [vmem:[%s2 + $0x20] sm:$0xff]
      %v406 = vld [vmem:[%s2 + $0x28] sm:$0xff]
      %v407 = vld [vmem:[%s2 + $0x30] sm:$0xff]
      %v408 = vld [vmem:[%s2 + $0x38] sm:$0xff]
      %v409 = vld [vmem:[%s2 + $0x40] sm:$0xff]
      %v410 = vld [vmem:[%s2 + $0x48] sm:$0xff]
      %v411 = vld [vmem:[%s2 + $0x50] sm:$0xff]
      %v412 = vld [vmem:[%s2 + $0x58] sm:$0xff]
      %v413 = vld [vmem:[%s2 + $0x60] sm:$0xff]
      %v414 = vld [vmem:[%s2 + $0x68] sm:$0xff]
      %v415 = vld [vmem:[%s2 + $0x70] sm:$0xff]
      %v416 = vld [vmem:[%s2 + $0x78] sm:$0xff]
      %s417 = scalar_lea.vmem %s3, 2
      %v418 = vld [vmem:[%s417] sm:$0x3]
      %v420 = vsel %vm353, %v418, 0
      %422 = vmatprep.subr.bf16.mxu0 0
      %423 = vmatpush1.bf16.msra.mxu0 %v359
      %424 = vmatprep.subr.bf16.mxu0 0
      %425 = vmatpush1.bf16.msra.mxu0 0
      %426 = vmatprep.subr.bf16.mxu0 0
      %427 = vmatpush1.bf16.msra.mxu0 0
      %428 = vmatprep.subr.bf16.mxu0 0
      %429 = vmatpush1.bf16.msra.mxu0 0
      %430 = vmatprep.subr.bf16.mxu0 0
      %431 = vmatpush1.bf16.msra.mxu0 0
      %432 = vmatprep.subr.bf16.mxu0 0
      %433 = vmatpush1.bf16.msra.mxu0 0
      %434 = vmatprep.subr.bf16.mxu0 0
      %435 = vmatpush1.bf16.msra.mxu0 0
      %436 = vmatprep.subr.bf16.mxu0 0
      %437 = vmatpush1.bf16.msra.mxu0 0
      %438 = vmatprep.subr.bf16.mxu0 0
      %439 = vmatpush1.bf16.msra.mxu0 0
      %440 = vmatprep.subr.bf16.mxu0 0
      %441 = vmatpush1.bf16.msra.mxu0 0
      %442 = vmatprep.subr.bf16.mxu0 0
      %443 = vmatpush1.bf16.msra.mxu0 0
      %444 = vmatprep.subr.bf16.mxu0 0
      %445 = vmatpush1.bf16.msra.mxu0 0
      %446 = vmatprep.subr.bf16.mxu0 0
      %447 = vmatpush1.bf16.msra.mxu0 0
      %448 = vmatprep.subr.bf16.mxu0 0
      %449 = vmatpush1.bf16.msra.mxu0 0
      %450 = vmatprep.subr.bf16.mxu0 0
      %451 = vmatpush1.bf16.msra.mxu0 0
      %452 = vmatprep.subr.bf16.mxu0 0
      %453 = vmatpush1.bf16.msra.mxu0 0
      %454 = vmatprep.mubr.bf16.mxu0 0
      %455 = vmatmul.mubr.bf16.gmra.mrb[0].mxu0 %v420
      %v456 = vpop.f32.mrb[0].mxu0
      %v457 = vadd.f32 0.0, %v456
      %v458 = vpop.f32.mrb[0].mxu0
      %v459 = vpop.f32.mrb[0].mxu0
      %v460 = vpop.f32.mrb[0].mxu0
      %461 = vdwg.mxu0
      %s462 = scalar_lea.vmem %s2, 128
      %v463 = vld [vmem:[%s462] sm:$0xff]
      %v464 = vld [vmem:[%s462 + $0x8] sm:$0xff]
      %v465 = vld [vmem:[%s462 + $0x10] sm:$0xff]
      %v466 = vld [vmem:[%s462 + $0x18] sm:$0xff]
      %v467 = vld [vmem:[%s462 + $0x20] sm:$0xff]
      %v468 = vld [vmem:[%s462 + $0x28] sm:$0xff]
      %v469 = vld [vmem:[%s462 + $0x30] sm:$0xff]
      %v470 = vld [vmem:[%s462 + $0x38] sm:$0xff]
      %v471 = vld [vmem:[%s462 + $0x40] sm:$0xff]
      %v472 = vld [vmem:[%s462 + $0x48] sm:$0xff]
      %v473 = vld [vmem:[%s462 + $0x50] sm:$0xff]
      %v474 = vld [vmem:[%s462 + $0x58] sm:$0xff]
      %v475 = vld [vmem:[%s462 + $0x60] sm:$0xff]
      %v476 = vld [vmem:[%s462 + $0x68] sm:$0xff]
      %v477 = vld [vmem:[%s462 + $0x70] sm:$0xff]
      %v478 = vld [vmem:[%s462 + $0x78] sm:$0xff]
      %vm479 = vcmask 523264
      %v481 = vsel %vm479, %v457, 0
      %483 = vmatprep.subr.mxu0 %v464
      %484 = vmatpush1.msra.mxu0 %v463
      %485 = vmatprep.subr.mxu0 %v466
      %486 = vmatpush1.msra.mxu0 %v465
      %487 = vmatprep.subr.mxu0 %v468
      %488 = vmatpush1.msra.mxu0 %v467
      %489 = vmatprep.subr.mxu0 %v470
      %490 = vmatpush1.msra.mxu0 %v469
      %491 = vmatprep.subr.mxu0 %v472
      %492 = vmatpush1.msra.mxu0 %v471
      %493 = vmatprep.subr.mxu0 %v474
      %494 = vmatpush1.msra.mxu0 %v473
      %495 = vmatprep.subr.mxu0 %v476
      %496 = vmatpush1.msra.mxu0 %v475
      %497 = vmatprep.subr.mxu0 %v478
      %498 = vmatpush1.msra.mxu0 %v477
      %499 = vmatprep.subr.mxu0 0.0
      %500 = vmatpush1.msra.mxu0 0.0
      %501 = vmatprep.subr.mxu0 0.0
      %502 = vmatpush1.msra.mxu0 0.0
      %503 = vmatprep.subr.mxu0 0.0
      %504 = vmatpush1.msra.mxu0 0.0
      %505 = vmatprep.subr.mxu0 0.0
      %506 = vmatpush1.msra.mxu0 0.0
      %507 = vmatprep.subr.mxu0 0.0
      %508 = vmatpush1.msra.mxu0 0.0
      %509 = vmatprep.subr.mxu0 0.0
      %510 = vmatpush1.msra.mxu0 0.0
      %511 = vmatprep.subr.mxu0 0.0
      %512 = vmatpush1.msra.mxu0 0.0
      %513 = vmatprep.subr.mxu0 0.0
      %514 = vmatpush1.msra.mxu0 0.0
      %515 = vmatprep.subr.mxu0 0.0
      %516 = vmatpush1.msra.mxu0 0.0
      %517 = vmatprep.subr.mxu0 0.0
      %518 = vmatpush1.msra.mxu0 0.0
      %519 = vmatprep.subr.mxu0 0.0
      %520 = vmatpush1.msra.mxu0 0.0
      %521 = vmatprep.subr.mxu0 0.0
      %522 = vmatpush1.msra.mxu0 0.0
      %523 = vmatprep.subr.mxu0 0.0
      %524 = vmatpush1.msra.mxu0 0.0
      %525 = vmatprep.subr.mxu0 0.0
      %526 = vmatpush1.msra.mxu0 0.0
      %527 = vmatprep.subr.mxu0 0.0
      %528 = vmatpush1.msra.mxu0 0.0
      %529 = vmatprep.subr.mxu0 0.0
      %530 = vmatpush1.msra.mxu0 0.0
      %531 = vmatprep.subr.mxu0 0.0
      %532 = vmatpush1.msra.mxu0 0.0
      %533 = vmatprep.subr.mxu0 0.0
      %534 = vmatpush1.msra.mxu0 0.0
      %535 = vmatprep.subr.mxu0 0.0
      %536 = vmatpush1.msra.mxu0 0.0
      %537 = vmatprep.subr.mxu0 0.0
      %538 = vmatpush1.msra.mxu0 0.0
      %539 = vmatprep.subr.mxu0 0.0
      %540 = vmatpush1.msra.mxu0 0.0
      %541 = vmatprep.subr.mxu0 0.0
      %542 = vmatpush1.msra.mxu0 0.0
      %543 = vmatprep.subr.mxu0 0.0
      %544 = vmatpush1.msra.mxu0 0.0
      %545 = vmatprep.subr.mxu0 0.0
      %546 = vmatpush1.msra.mxu0 0.0
      %547 = vmatprep.mubr.f32.mxu0 0.0
      %548 = vmatmul.mubr.f32.gmra.mrb[0].mxu0 %v481
      %v549 = vpop.f32.mrb[0].mxu0
      %v550 = vadd.f32 0.0, %v549
      %v551 = vpop.f32.mrb[0].mxu0
      %v552 = vadd.f32 0.0, %v551
      %553 = vdwg.mxu0
      %v555 = vsel %vm479, %v396, 0
      %557 = vmatprep.subr.mxu0 %v402
      %558 = vmatpush1.msra.mxu0 %v401
      %559 = vmatprep.subr.mxu0 %v404
      %560 = vmatpush1.msra.mxu0 %v403
      %561 = vmatprep.subr.mxu0 %v406
      %562 = vmatpush1.msra.mxu0 %v405
      %563 = vmatprep.subr.mxu0 %v408
      %564 = vmatpush1.msra.mxu0 %v407
      %565 = vmatprep.subr.mxu0 %v410
      %566 = vmatpush1.msra.mxu0 %v409
      %567 = vmatprep.subr.mxu0 %v412
      %568 = vmatpush1.msra.mxu0 %v411
      %569 = vmatprep.subr.mxu0 %v414
      %570 = vmatpush1.msra.mxu0 %v413
      %571 = vmatprep.subr.mxu0 %v416
      %572 = vmatpush1.msra.mxu0 %v415
      %573 = vmatprep.subr.mxu0 0.0
      %574 = vmatpush1.msra.mxu0 0.0
      %575 = vmatprep.subr.mxu0 0.0
      %576 = vmatpush1.msra.mxu0 0.0
      %577 = vmatprep.subr.mxu0 0.0
      %578 = vmatpush1.msra.mxu0 0.0
      %579 = vmatprep.subr.mxu0 0.0
      %580 = vmatpush1.msra.mxu0 0.0
      %581 = vmatprep.subr.mxu0 0.0
      %582 = vmatpush1.msra.mxu0 0.0
      %583 = vmatprep.subr.mxu0 0.0
      %584 = vmatpush1.msra.mxu0 0.0
      %585 = vmatprep.subr.mxu0 0.0
      %586 = vmatpush1.msra.mxu0 0.0
      %587 = vmatprep.subr.mxu0 0.0
      %588 = vmatpush1.msra.mxu0 0.0
      %589 = vmatprep.subr.mxu0 0.0
      %590 = vmatpush1.msra.mxu0 0.0
      %591 = vmatprep.subr.mxu0 0.0
      %592 = vmatpush1.msra.mxu0 0.0
      %593 = vmatprep.subr.mxu0 0.0
      %594 = vmatpush1.msra.mxu0 0.0
      %595 = vmatprep.subr.mxu0 0.0
      %596 = vmatpush1.msra.mxu0 0.0
      %597 = vmatprep.subr.mxu0 0.0
      %598 = vmatpush1.msra.mxu0 0.0
      %599 = vmatprep.subr.mxu0 0.0
      %600 = vmatpush1.msra.mxu0 0.0
      %601 = vmatprep.subr.mxu0 0.0
      %602 = vmatpush1.msra.mxu0 0.0
      %603 = vmatprep.subr.mxu0 0.0
      %604 = vmatpush1.msra.mxu0 0.0
      %605 = vmatprep.subr.mxu0 0.0
      %606 = vmatpush1.msra.mxu0 0.0
      %607 = vmatprep.subr.mxu0 0.0
      %608 = vmatpush1.msra.mxu0 0.0
      %609 = vmatprep.subr.mxu0 0.0
      %610 = vmatpush1.msra.mxu0 0.0
      %611 = vmatprep.subr.mxu0 0.0
      %612 = vmatpush1.msra.mxu0 0.0
      %613 = vmatprep.subr.mxu0 0.0
      %614 = vmatpush1.msra.mxu0 0.0
      %615 = vmatprep.subr.mxu0 0.0
      %616 = vmatpush1.msra.mxu0 0.0
      %617 = vmatprep.subr.mxu0 0.0
      %618 = vmatpush1.msra.mxu0 0.0
      %619 = vmatprep.subr.mxu0 0.0
      %620 = vmatpush1.msra.mxu0 0.0
      %621 = vmatprep.mubr.f32.mxu0 0.0
      %622 = vmatmul.mubr.f32.gmra.mrb[0].mxu0 %v555
      %v623 = vpop.f32.mrb[0].mxu0
      %v624 = vadd.f32 %v550, %v623
      %v625 = vpop.f32.mrb[0].mxu0
      %v626 = vadd.f32 %v552, %v625
      %627 = vdwg.mxu0
      %s628 = scalar_lea.vmem %s3, 4
      %v629 = vld [vmem:[%s628] sm:$0x3]
      %v631 = vsel %vm353, %v629, 0
      %633 = vmatprep.subr.bf16.mxu0 0
      %634 = vmatpush1.bf16.msra.mxu0 %v359
      %635 = vmatprep.subr.bf16.mxu0 0
      %636 = vmatpush1.bf16.msra.mxu0 0
      %637 = vmatprep.subr.bf16.mxu0 0
      %638 = vmatpush1.bf16.msra.mxu0 0
      %639 = vmatprep.subr.bf16.mxu0 0
      %640 = vmatpush1.bf16.msra.mxu0 0
      %641 = vmatprep.subr.bf16.mxu0 0
      %642 = vmatpush1.bf16.msra.mxu0 0
      %643 = vmatprep.subr.bf16.mxu0 0
      %644 = vmatpush1.bf16.msra.mxu0 0
      %645 = vmatprep.subr.bf16.mxu0 0
      %646 = vmatpush1.bf16.msra.mxu0 0
      %647 = vmatprep.subr.bf16.mxu0 0
      %648 = vmatpush1.bf16.msra.mxu0 0
      %649 = vmatprep.subr.bf16.mxu0 0
      %650 = vmatpush1.bf16.msra.mxu0 0
      %651 = vmatprep.subr.bf16.mxu0 0
      %652 = vmatpush1.bf16.msra.mxu0 0
      %653 = vmatprep.subr.bf16.mxu0 0
      %654 = vmatpush1.bf16.msra.mxu0 0
      %655 = vmatprep.subr.bf16.mxu0 0
      %656 = vmatpush1.bf16.msra.mxu0 0
      %657 = vmatprep.subr.bf16.mxu0 0
      %658 = vmatpush1.bf16.msra.mxu0 0
      %659 = vmatprep.subr.bf16.mxu0 0
      %660 = vmatpush1.bf16.msra.mxu0 0
      %661 = vmatprep.subr.bf16.mxu0 0
      %662 = vmatpush1.bf16.msra.mxu0 0
      %663 = vmatprep.subr.bf16.mxu0 0
      %664 = vmatpush1.bf16.msra.mxu0 0
      %665 = vmatprep.mubr.bf16.mxu0 0
      %666 = vmatmul.mubr.bf16.gmra.mrb[0].mxu0 %v631
      %v667 = vpop.f32.mrb[0].mxu0
      %v668 = vadd.f32 0.0, %v667
      %v669 = vpop.f32.mrb[0].mxu0
      %v670 = vpop.f32.mrb[0].mxu0
      %v671 = vpop.f32.mrb[0].mxu0
      %672 = vdwg.mxu0
      %s673 = scalar_lea.vmem %s2, 256
      %v674 = vld [vmem:[%s673] sm:$0xff]
      %v675 = vld [vmem:[%s673 + $0x8] sm:$0xff]
      %v676 = vld [vmem:[%s673 + $0x10] sm:$0xff]
      %v677 = vld [vmem:[%s673 + $0x18] sm:$0xff]
      %v678 = vld [vmem:[%s673 + $0x20] sm:$0xff]
      %v679 = vld [vmem:[%s673 + $0x28] sm:$0xff]
      %v680 = vld [vmem:[%s673 + $0x30] sm:$0xff]
      %v681 = vld [vmem:[%s673 + $0x38] sm:$0xff]
      %v682 = vld [vmem:[%s673 + $0x40] sm:$0xff]
      %v683 = vld [vmem:[%s673 + $0x48] sm:$0xff]
      %v684 = vld [vmem:[%s673 + $0x50] sm:$0xff]
      %v685 = vld [vmem:[%s673 + $0x58] sm:$0xff]
      %v686 = vld [vmem:[%s673 + $0x60] sm:$0xff]
      %v687 = vld [vmem:[%s673 + $0x68] sm:$0xff]
      %v688 = vld [vmem:[%s673 + $0x70] sm:$0xff]
      %v689 = vld [vmem:[%s673 + $0x78] sm:$0xff]
      %v691 = vsel %vm479, %v668, 0
      %693 = vmatprep.subr.mxu0 %v675
      %694 = vmatpush1.msra.mxu0 %v674
      %695 = vmatprep.subr.mxu0 %v677
      %696 = vmatpush1.msra.mxu0 %v676
      %697 = vmatprep.subr.mxu0 %v679
      %698 = vmatpush1.msra.mxu0 %v678
      %699 = vmatprep.subr.mxu0 %v681
      %700 = vmatpush1.msra.mxu0 %v680
      %701 = vmatprep.subr.mxu0 %v683
      %702 = vmatpush1.msra.mxu0 %v682
      %703 = vmatprep.subr.mxu0 %v685
      %704 = vmatpush1.msra.mxu0 %v684
      %705 = vmatprep.subr.mxu0 %v687
      %706 = vmatpush1.msra.mxu0 %v686
      %707 = vmatprep.subr.mxu0 %v689
      %708 = vmatpush1.msra.mxu0 %v688
      %709 = vmatprep.subr.mxu0 0.0
      %710 = vmatpush1.msra.mxu0 0.0
      %711 = vmatprep.subr.mxu0 0.0
      %712 = vmatpush1.msra.mxu0 0.0
      %713 = vmatprep.subr.mxu0 0.0
      %714 = vmatpush1.msra.mxu0 0.0
      %715 = vmatprep.subr.mxu0 0.0
      %716 = vmatpush1.msra.mxu0 0.0
      %717 = vmatprep.subr.mxu0 0.0
      %718 = vmatpush1.msra.mxu0 0.0
      %719 = vmatprep.subr.mxu0 0.0
      %720 = vmatpush1.msra.mxu0 0.0
      %721 = vmatprep.subr.mxu0 0.0
      %722 = vmatpush1.msra.mxu0 0.0
      %723 = vmatprep.subr.mxu0 0.0
      %724 = vmatpush1.msra.mxu0 0.0
      %725 = vmatprep.subr.mxu0 0.0
      %726 = vmatpush1.msra.mxu0 0.0
      %727 = vmatprep.subr.mxu0 0.0
      %728 = vmatpush1.msra.mxu0 0.0
      %729 = vmatprep.subr.mxu0 0.0
      %730 = vmatpush1.msra.mxu0 0.0
      %731 = vmatprep.subr.mxu0 0.0
      %732 = vmatpush1.msra.mxu0 0.0
      %733 = vmatprep.subr.mxu0 0.0
      %734 = vmatpush1.msra.mxu0 0.0
      %735 = vmatprep.subr.mxu0 0.0
      %736 = vmatpush1.msra.mxu0 0.0
      %737 = vmatprep.subr.mxu0 0.0
      %738 = vmatpush1.msra.mxu0 0.0
      %739 = vmatprep.subr.mxu0 0.0
      %740 = vmatpush1.msra.mxu0 0.0
      %741 = vmatprep.subr.mxu0 0.0
      %742 = vmatpush1.msra.mxu0 0.0
      %743 = vmatprep.subr.mxu0 0.0
      %744 = vmatpush1.msra.mxu0 0.0
      %745 = vmatprep.subr.mxu0 0.0
      %746 = vmatpush1.msra.mxu0 0.0
      %747 = vmatprep.subr.mxu0 0.0
      %748 = vmatpush1.msra.mxu0 0.0
      %749 = vmatprep.subr.mxu0 0.0
      %750 = vmatpush1.msra.mxu0 0.0
      %751 = vmatprep.subr.mxu0 0.0
      %752 = vmatpush1.msra.mxu0 0.0
      %753 = vmatprep.subr.mxu0 0.0
      %754 = vmatpush1.msra.mxu0 0.0
      %755 = vmatprep.subr.mxu0 0.0
      %756 = vmatpush1.msra.mxu0 0.0
      %757 = vmatprep.mubr.f32.mxu0 0.0
      %758 = vmatmul.mubr.f32.gmra.mrb[0].mxu0 %v691
      %v759 = vpop.f32.mrb[0].mxu0
      %v760 = vadd.f32 0.0, %v759
      %v761 = vpop.f32.mrb[0].mxu0
      %v762 = vadd.f32 0.0, %v761
      %763 = vdwg.mxu0
      %v764 = vadd.f32 %v624, %v760
      %v765 = vadd.f32 %v626, %v762
      %s766 = scalar_lea.vmem %s3, 6
      %v767 = vld [vmem:[%s766] sm:$0x3]
      %v769 = vsel %vm353, %v767, 0
      %771 = vmatprep.subr.bf16.mxu0 0
      %772 = vmatpush1.bf16.msra.mxu0 %v359
      %773 = vmatprep.subr.bf16.mxu0 0
      %774 = vmatpush1.bf16.msra.mxu0 0
      %775 = vmatprep.subr.bf16.mxu0 0
      %776 = vmatpush1.bf16.msra.mxu0 0
      %777 = vmatprep.subr.bf16.mxu0 0
      %778 = vmatpush1.bf16.msra.mxu0 0
      %779 = vmatprep.subr.bf16.mxu0 0
      %780 = vmatpush1.bf16.msra.mxu0 0
      %781 = vmatprep.subr.bf16.mxu0 0
      %782 = vmatpush1.bf16.msra.mxu0 0
      %783 = vmatprep.subr.bf16.mxu0 0
      %784 = vmatpush1.bf16.msra.mxu0 0
      %785 = vmatprep.subr.bf16.mxu0 0
      %786 = vmatpush1.bf16.msra.mxu0 0
      %787 = vmatprep.subr.bf16.mxu0 0
      %788 = vmatpush1.bf16.msra.mxu0 0
      %789 = vmatprep.subr.bf16.mxu0 0
      %790 = vmatpush1.bf16.msra.mxu0 0
      %791 = vmatprep.subr.bf16.mxu0 0
      %792 = vmatpush1.bf16.msra.mxu0 0
      %793 = vmatprep.subr.bf16.mxu0 0
      %794 = vmatpush1.bf16.msra.mxu0 0
      %795 = vmatprep.subr.bf16.mxu0 0
      %796 = vmatpush1.bf16.msra.mxu0 0
      %797 = vmatprep.subr.bf16.mxu0 0
      %798 = vmatpush1.bf16.msra.mxu0 0
      %799 = vmatprep.subr.bf16.mxu0 0
      %800 = vmatpush1.bf16.msra.mxu0 0
      %801 = vmatprep.subr.bf16.mxu0 0
      %802 = vmatpush1.bf16.msra.mxu0 0
      %803 = vmatprep.mubr.bf16.mxu0 0
      %804 = vmatmul.mubr.bf16.gmra.mrb[0].mxu0 %v769
      %v805 = vpop.f32.mrb[0].mxu0
      %v806 = vadd.f32 0.0, %v805
      %v807 = vpop.f32.mrb[0].mxu0
      %v808 = vpop.f32.mrb[0].mxu0
      %v809 = vpop.f32.mrb[0].mxu0
      %810 = vdwg.mxu0
      %s811 = scalar_lea.vmem %s2, 384
      %v812 = vld [vmem:[%s811] sm:$0xff]
      %v813 = vld [vmem:[%s811 + $0x8] sm:$0xff]
      %v814 = vld [vmem:[%s811 + $0x10] sm:$0xff]
      %v815 = vld [vmem:[%s811 + $0x18] sm:$0xff]
      %v816 = vld [vmem:[%s811 + $0x20] sm:$0xff]
      %v817 = vld [vmem:[%s811 + $0x28] sm:$0xff]
      %v818 = vld [vmem:[%s811 + $0x30] sm:$0xff]
      %v819 = vld [vmem:[%s811 + $0x38] sm:$0xff]
      %v820 = vld [vmem:[%s811 + $0x40] sm:$0xff]
      %v821 = vld [vmem:[%s811 + $0x48] sm:$0xff]
      %v822 = vld [vmem:[%s811 + $0x50] sm:$0xff]
      %v823 = vld [vmem:[%s811 + $0x58] sm:$0xff]
      %v824 = vld [vmem:[%s811 + $0x60] sm:$0xff]
      %v825 = vld [vmem:[%s811 + $0x68] sm:$0xff]
      %v826 = vld [vmem:[%s811 + $0x70] sm:$0xff]
      %v827 = vld [vmem:[%s811 + $0x78] sm:$0xff]
      %v829 = vsel %vm479, %v806, 0
      %831 = vmatprep.subr.mxu0 %v813
      %832 = vmatpush1.msra.mxu0 %v812
      %833 = vmatprep.subr.mxu0 %v815
      %834 = vmatpush1.msra.mxu0 %v814
      %835 = vmatprep.subr.mxu0 %v817
      %836 = vmatpush1.msra.mxu0 %v816
      %837 = vmatprep.subr.mxu0 %v819
      %838 = vmatpush1.msra.mxu0 %v818
      %839 = vmatprep.subr.mxu0 %v821
      %840 = vmatpush1.msra.mxu0 %v820
      %841 = vmatprep.subr.mxu0 %v823
      %842 = vmatpush1.msra.mxu0 %v822
      %843 = vmatprep.subr.mxu0 %v825
      %844 = vmatpush1.msra.mxu0 %v824
      %845 = vmatprep.subr.mxu0 %v827
      %846 = vmatpush1.msra.mxu0 %v826
      %847 = vmatprep.subr.mxu0 0.0
      %848 = vmatpush1.msra.mxu0 0.0
      %849 = vmatprep.subr.mxu0 0.0
      %850 = vmatpush1.msra.mxu0 0.0
      %851 = vmatprep.subr.mxu0 0.0
      %852 = vmatpush1.msra.mxu0 0.0
      %853 = vmatprep.subr.mxu0 0.0
      %854 = vmatpush1.msra.mxu0 0.0
      %855 = vmatprep.subr.mxu0 0.0
      %856 = vmatpush1.msra.mxu0 0.0
      %857 = vmatprep.subr.mxu0 0.0
      %858 = vmatpush1.msra.mxu0 0.0
      %859 = vmatprep.subr.mxu0 0.0
      %860 = vmatpush1.msra.mxu0 0.0
      %861 = vmatprep.subr.mxu0 0.0
      %862 = vmatpush1.msra.mxu0 0.0
      %863 = vmatprep.subr.mxu0 0.0
      %864 = vmatpush1.msra.mxu0 0.0
      %865 = vmatprep.subr.mxu0 0.0
      %866 = vmatpush1.msra.mxu0 0.0
      %867 = vmatprep.subr.mxu0 0.0
      %868 = vmatpush1.msra.mxu0 0.0
      %869 = vmatprep.subr.mxu0 0.0
      %870 = vmatpush1.msra.mxu0 0.0
      %871 = vmatprep.subr.mxu0 0.0
      %872 = vmatpush1.msra.mxu0 0.0
      %873 = vmatprep.subr.mxu0 0.0
      %874 = vmatpush1.msra.mxu0 0.0
      %875 = vmatprep.subr.mxu0 0.0
      %876 = vmatpush1.msra.mxu0 0.0
      %877 = vmatprep.subr.mxu0 0.0
      %878 = vmatpush1.msra.mxu0 0.0
      %879 = vmatprep.subr.mxu0 0.0
      %880 = vmatpush1.msra.mxu0 0.0
      %881 = vmatprep.subr.mxu0 0.0
      %882 = vmatpush1.msra.mxu0 0.0
      %883 = vmatprep.subr.mxu0 0.0
      %884 = vmatpush1.msra.mxu0 0.0
      %885 = vmatprep.subr.mxu0 0.0
      %886 = vmatpush1.msra.mxu0 0.0
      %887 = vmatprep.subr.mxu0 0.0
      %888 = vmatpush1.msra.mxu0 0.0
      %889 = vmatprep.subr.mxu0 0.0
      %890 = vmatpush1.msra.mxu0 0.0
      %891 = vmatprep.subr.mxu0 0.0
      %892 = vmatpush1.msra.mxu0 0.0
      %893 = vmatprep.subr.mxu0 0.0
      %894 = vmatpush1.msra.mxu0 0.0
      %895 = vmatprep.mubr.f32.mxu0 0.0
      %896 = vmatmul.mubr.f32.gmra.mrb[0].mxu0 %v829
      %v897 = vpop.f32.mrb[0].mxu0
      %v898 = vadd.f32 0.0, %v897
      %v899 = vpop.f32.mrb[0].mxu0
      %v900 = vadd.f32 0.0, %v899
      %901 = vdwg.mxu0
      %v902 = vadd.f32 %v764, %v898
      %v903 = vadd.f32 %v765, %v900
      %v904 = vld [vmem:[%s8] sm:$0xf]
      %906 = vset.pattern.permute.xlu0 0
      %907 = vperm.xlu0 %906, %v904
      %v908 = vpop.permute.xlu0 %907
      %v910 = vadd.f32 %v902, %v908
      %v911 = vadd.f32 %v903, %v908
      %912 = vst [vmem:[#allocation2] sm:$0xf] %v910
      %913 = vst [vmem:[#allocation2 + $0x8] sm:$0xf] %v911
      %v914 = vld [vmem:[%s344] sm:$0xf]
      %v915 = vunpack.c.l.bf16 %v914
      %v917 = vcombine.low %v915, %v915
      %919 = vst [vmem:[#allocation2] sm:$0xf0] %v917
      %920 = vst [vmem:[#allocation2 + $0x8] sm:$0xf0] %v915
      %v921 = vld [vmem:[#allocation2] sm:$0xff]
      %v922 = vld [vmem:[#allocation2 + $0x8] sm:$0xff]
      %923 = vrot.lane.b32.xlu0 %v921, 17
      %v924 = vpop.permute.xlu0 %923
      %925 = vrot.lane.b32.xlu0 %v922, 17
      %v926 = vpop.permute.xlu0 %925
      %v927 = vlaneseq
      %v928 = vand.u32 %v927, 127
      %vm929 = vcmp.lt.s32.totalorder %v928, 17
      %v930 = vsel %vm929, %v924, %v926
      %v931 = vsel %vm929, %v926, %v924
      %v932 = vld [vmem:[%s7] ss:$8 sm:$0x3]
      %v934 = vlaneseq
      %v935 = vshrl.u32 %v934, 7
      %v936 = vsub.s32 0, %v935
      %v937 = vrot.slane %v932, %v936
      %v938 = vlaneseq
      %v939 = vshrl.u32 %v938, 7
      %v940 = vsub.s32 1, %v939
      %v941 = vrot.slane %v932, %v940
      %v944 = vmul.f32 %v931, %v937
      %v945 = vmul.f32 %v930, %v941
      %v946 = vpack.c.bf16 %v944, %v944
      %v947 = vpack.c.bf16 %v945, %v945
      %v950 = vunpack.c.l.b16 %v946
      %v951 = vunpack.c.l.b16 %v947
      %v952 = vpack.c.b16 %v951, %v950
      %954 = vst [vmem:[#allocation3] sm:$0xff] %v952
      %955 = vrot.lane.b32.xlu0 %v921, 16
      %v956 = vpop.permute.xlu0 %955
      %957 = vrot.lane.b32.xlu0 %v922, 16
      %v958 = vpop.permute.xlu0 %957
      %vm959 = vcmp.lt.s32.totalorder %v928, 16
      %v960 = vsel %vm959, %v956, %v958
      %v961 = vsel %vm959, %v958, %v956
      %s962 = scalar_lea.vmem %s7, 1
      %v963 = vld [vmem:[%s962] ss:$8 sm:$0x3]
      %v965 = vlaneseq
      %v966 = vshrl.u32 %v965, 7
      %v967 = vsub.s32 0, %v966
      %v968 = vrot.slane %v963, %v967
      %v969 = vlaneseq
      %v970 = vshrl.u32 %v969, 7
      %v971 = vsub.s32 1, %v970
      %v972 = vrot.slane %v963, %v971
      %v975 = vmul.f32 %v961, %v968
      %v976 = vmul.f32 %v960, %v972
      %v977 = vpack.c.bf16 %v975, %v975
      %v978 = vpack.c.bf16 %v976, %v976
      %v981 = vunpack.c.l.b16 %v977
      %v982 = vunpack.c.l.b16 %v978
      %v983 = vpack.c.b16 %v982, %v981
      %985 = vst [vmem:[#allocation3 + $0x8] sm:$0xff] %v983
      %986 = vrot.lane.b32.xlu0 %v921, 15
      %v987 = vpop.permute.xlu0 %986
      %988 = vrot.lane.b32.xlu0 %v922, 15
      %v989 = vpop.permute.xlu0 %988
      %vm990 = vcmp.lt.s32.totalorder %v928, 15
      %v991 = vsel %vm990, %v987, %v989
      %v992 = vsel %vm990, %v989, %v987
      %s993 = scalar_lea.vmem %s7, 2
      %v994 = vld [vmem:[%s993] ss:$8 sm:$0x3]
      %v996 = vlaneseq
      %v997 = vshrl.u32 %v996, 7
      %v998 = vsub.s32 0, %v997
      %v999 = vrot.slane %v994, %v998
      %v1000 = vlaneseq
      %v1001 = vshrl.u32 %v1000, 7
      %v1002 = vsub.s32 1, %v1001
      %v1003 = vrot.slane %v994, %v1002
      %v1006 = vmul.f32 %v992, %v999
      %v1007 = vmul.f32 %v991, %v1003
      %v1008 = vpack.c.bf16 %v1006, %v1006
      %v1009 = vpack.c.bf16 %v1007, %v1007
      %v1012 = vunpack.c.l.b16 %v1008
      %v1013 = vunpack.c.l.b16 %v1009
      %v1014 = vpack.c.b16 %v1013, %v1012
      %1016 = vst [vmem:[#allocation3 + $0x10] sm:$0xff] %v1014
      %1017 = vrot.lane.b32.xlu0 %v921, 1
      %v1018 = vpop.permute.xlu0 %1017
      %1019 = vrot.lane.b32.xlu0 %v922, 1
      %v1020 = vpop.permute.xlu0 %1019
      %vm1021 = vcmp.lt.s32.totalorder %v928, 1
      %v1022 = vsel %vm1021, %v1018, %v1020
      %v1023 = vsel %vm1021, %v1020, %v1018
      %s1024 = scalar_lea.vmem %s7, 3
      %v1025 = vld [vmem:[%s1024] ss:$8 sm:$0x3]
      %v1027 = vlaneseq
      %v1028 = vshrl.u32 %v1027, 7
      %v1029 = vsub.s32 0, %v1028
      %v1030 = vrot.slane %v1025, %v1029
      %v1031 = vlaneseq
      %v1032 = vshrl.u32 %v1031, 7
      %v1033 = vsub.s32 1, %v1032
      %v1034 = vrot.slane %v1025, %v1033
      %v1037 = vmul.f32 %v1023, %v1030
      %v1038 = vmul.f32 %v1022, %v1034
      %v1039 = vpack.c.bf16 %v1037, %v1037
      %v1040 = vpack.c.bf16 %v1038, %v1038
      %v1043 = vunpack.c.l.b16 %v1039
      %v1044 = vunpack.c.l.b16 %v1040
      %v1045 = vpack.c.b16 %v1044, %v1043
      %1047 = vst [vmem:[#allocation3 + $0x18] sm:$0xff] %v1045
      %s1048 = scalar_lea.vmem %s7, 4
      %v1049 = vld [vmem:[%s1048] ss:$8 sm:$0x3]
      %v1051 = vlaneseq
      %v1052 = vshrl.u32 %v1051, 7
      %v1053 = vsub.s32 0, %v1052
      %v1054 = vrot.slane %v1049, %v1053
      %v1055 = vlaneseq
      %v1056 = vshrl.u32 %v1055, 7
      %v1057 = vsub.s32 1, %v1056
      %v1058 = vrot.slane %v1049, %v1057
      %v1061 = vmul.f32 %v921, %v1054
      %v1062 = vmul.f32 %v922, %v1058
      %v1063 = vpack.c.bf16 %v1061, %v1061
      %v1064 = vpack.c.bf16 %v1062, %v1062
      %v1067 = vunpack.c.l.b16 %v1063
      %v1068 = vunpack.c.l.b16 %v1064
      %v1069 = vpack.c.b16 %v1068, %v1067
      %1071 = vst [vmem:[#allocation3 + $0x20] sm:$0xff] %v1069
      %1072 = vrot.lane.b32.xlu0 %v921, 127
      %v1073 = vpop.permute.xlu0 %1072
      %1074 = vrot.lane.b32.xlu0 %v922, 127
      %v1075 = vpop.permute.xlu0 %1074
      %vm1076 = vcmp.lt.s32.totalorder %v928, 127
      %v1077 = vsel %vm1076, %v1073, %v1075
      %v1078 = vsel %vm1076, %v1075, %v1073
      %s1079 = scalar_lea.vmem %s7, 5
      %v1080 = vld [vmem:[%s1079] ss:$8 sm:$0x3]
      %v1082 = vlaneseq
      %v1083 = vshrl.u32 %v1082, 7
      %v1084 = vsub.s32 0, %v1083
      %v1085 = vrot.slane %v1080, %v1084
      %v1086 = vlaneseq
      %v1087 = vshrl.u32 %v1086, 7
      %v1088 = vsub.s32 1, %v1087
      %v1089 = vrot.slane %v1080, %v1088
      %v1092 = vmul.f32 %v1077, %v1085
      %v1093 = vmul.f32 %v1078, %v1089
      %v1094 = vpack.c.bf16 %v1092, %v1092
      %v1095 = vpack.c.bf16 %v1093, %v1093
      %v1098 = vunpack.c.l.b16 %v1094
      %v1099 = vunpack.c.l.b16 %v1095
      %v1100 = vpack.c.b16 %v1099, %v1098
      %1102 = vst [vmem:[#allocation3 + $0x28] sm:$0xff] %v1100
      %1103 = vrot.lane.b32.xlu0 %v921, 113
      %v1104 = vpop.permute.xlu0 %1103
      %1105 = vrot.lane.b32.xlu0 %v922, 113
      %v1106 = vpop.permute.xlu0 %1105
      %vm1107 = vcmp.lt.s32.totalorder %v928, 113
      %v1108 = vsel %vm1107, %v1104, %v1106
      %v1109 = vsel %vm1107, %v1106, %v1104
      %s1110 = scalar_lea.vmem %s7, 6
      %v1111 = vld [vmem:[%s1110] ss:$8 sm:$0x3]
      %v1113 = vlaneseq
      %v1114 = vshrl.u32 %v1113, 7
      %v1115 = vsub.s32 0, %v1114
      %v1116 = vrot.slane %v1111, %v1115
      %v1117 = vlaneseq
      %v1118 = vshrl.u32 %v1117, 7
      %v1119 = vsub.s32 1, %v1118
      %v1120 = vrot.slane %v1111, %v1119
      %v1123 = vmul.f32 %v1108, %v1116
      %v1124 = vmul.f32 %v1109, %v1120
      %v1125 = vpack.c.bf16 %v1123, %v1123
      %v1126 = vpack.c.bf16 %v1124, %v1124
      %v1129 = vunpack.c.l.b16 %v1125
      %v1130 = vunpack.c.l.b16 %v1126
      %v1131 = vpack.c.b16 %v1130, %v1129
      %1133 = vst [vmem:[#allocation3 + $0x30] sm:$0xff] %v1131
      %1134 = vrot.lane.b32.xlu0 %v921, 112
      %v1135 = vpop.permute.xlu0 %1134
      %1136 = vrot.lane.b32.xlu0 %v922, 112
      %v1137 = vpop.permute.xlu0 %1136
      %vm1138 = vcmp.lt.s32.totalorder %v928, 112
      %v1139 = vsel %vm1138, %v1135, %v1137
      %v1140 = vsel %vm1138, %v1137, %v1135
      %s1141 = scalar_lea.vmem %s7, 7
      %v1142 = vld [vmem:[%s1141] ss:$8 sm:$0x3]
      %v1144 = vlaneseq
      %v1145 = vshrl.u32 %v1144, 7
      %v1146 = vsub.s32 0, %v1145
      %v1147 = vrot.slane %v1142, %v1146
      %v1148 = vlaneseq
      %v1149 = vshrl.u32 %v1148, 7
      %v1150 = vsub.s32 1, %v1149
      %v1151 = vrot.slane %v1142, %v1150
      %v1154 = vmul.f32 %v1139, %v1147
      %v1155 = vmul.f32 %v1140, %v1151
      %v1156 = vpack.c.bf16 %v1154, %v1154
      %v1157 = vpack.c.bf16 %v1155, %v1155
      %v1160 = vunpack.c.l.b16 %v1156
      %v1161 = vunpack.c.l.b16 %v1157
      %v1162 = vpack.c.b16 %v1161, %v1160
      %1164 = vst [vmem:[#allocation3 + $0x38] sm:$0xff] %v1162
      %1165 = vrot.lane.b32.xlu0 %v921, 111
      %v1166 = vpop.permute.xlu0 %1165
      %1167 = vrot.lane.b32.xlu0 %v922, 111
      %v1168 = vpop.permute.xlu0 %1167
      %vm1169 = vcmp.lt.s32.totalorder %v928, 111
      %v1170 = vsel %vm1169, %v1166, %v1168
      %v1171 = vsel %vm1169, %v1168, %v1166
      %s1172 = scalar_lea.vmem %s7, 16
      %v1173 = vld [vmem:[%s1172] ss:$8 sm:$0x3]
      %v1175 = vlaneseq
      %v1176 = vshrl.u32 %v1175, 7
      %v1177 = vsub.s32 0, %v1176
      %v1178 = vrot.slane %v1173, %v1177
      %v1179 = vlaneseq
      %v1180 = vshrl.u32 %v1179, 7
      %v1181 = vsub.s32 1, %v1180
      %v1182 = vrot.slane %v1173, %v1181
      %v1185 = vmul.f32 %v1170, %v1178
      %v1186 = vmul.f32 %v1171, %v1182
      %v1187 = vpack.c.bf16 %v1185, %v1185
      %v1188 = vpack.c.bf16 %v1186, %v1186
      %v1191 = vunpack.c.l.b16 %v1187
      %v1192 = vunpack.c.l.b16 %v1188
      %v1193 = vpack.c.b16 %v1192, %v1191
      %1195 = vst [vmem:[#allocation3 + $0x40] sm:$0xff] %v1193
      %v1196 = vld [vmem:[%s4] sm:$0x3]
      %v1197 = vld [vmem:[#allocation3] sm:$0xff]
      %v1198 = vld [vmem:[#allocation3 + $0x8] sm:$0xff]
      %v1199 = vld [vmem:[#allocation3 + $0x10] sm:$0xff]
      %v1200 = vld [vmem:[#allocation3 + $0x18] sm:$0xff]
      %v1201 = vld [vmem:[#allocation3 + $0x20] sm:$0xff]
      %v1202 = vld [vmem:[#allocation3 + $0x28] sm:$0xff]
      %v1203 = vld [vmem:[#allocation3 + $0x30] sm:$0xff]
      %v1204 = vld [vmem:[#allocation3 + $0x38] sm:$0xff]
      %v1205 = vld [vmem:[#allocation3 + $0x40] sm:$0xff]
      %s1206 = scalar_lea.vmem %s8, 4
      %v1207 = vld [vmem:[%s1206] sm:$0xf]
      %1209 = vset.pattern.permute.xlu0 0
      %1210 = vperm.xlu0 %1209, %v1207
      %v1211 = vpop.permute.xlu0 %1210
      %v1222 = vunpack.c.l.b16 %v1197
      %v1223 = vunpack.c.h.b16 %v1197
      %v1224 = vunpack.c.l.b16 %v1198
      %v1225 = vunpack.c.h.b16 %v1198
      %v1226 = vunpack.c.l.b16 %v1199
      %v1227 = vunpack.c.h.b16 %v1199
      %v1228 = vunpack.c.l.b16 %v1200
      %v1229 = vunpack.c.h.b16 %v1200
      %v1230 = vunpack.c.l.b16 %v1201
      %v1231 = vunpack.c.h.b16 %v1201
      %v1232 = vunpack.c.l.b16 %v1202
      %v1233 = vunpack.c.h.b16 %v1202
      %v1234 = vunpack.c.l.b16 %v1203
      %v1235 = vunpack.c.h.b16 %v1203
      %v1236 = vunpack.c.l.b16 %v1204
      %v1237 = vunpack.c.h.b16 %v1204
      %v1238 = vunpack.c.l.b16 %v1205
      %v1239 = vunpack.c.h.b16 %v1205
      %v1240 = vpack.c.b16 %v1224, %v1222
      %v1241 = vpack.c.b16 %v1225, %v1223
      %v1242 = vpack.c.b16 %v1228, %v1226
      %v1243 = vpack.c.b16 %v1229, %v1227
      %v1244 = vpack.c.b16 %v1232, %v1230
      %v1245 = vpack.c.b16 %v1233, %v1231
      %v1246 = vpack.c.b16 %v1236, %v1234
      %v1247 = vpack.c.b16 %v1237, %v1235
      %v1248 = vpack.c.b16 %v1238, %v1238
      %v1249 = vpack.c.b16 %v1239, %v1239
      %vm1258 = vcmask 588800
      %v1260 = vsel %vm1258, %v1196, 0
      %v1263 = vsel %vm357, %v1248, 0
      %v1266 = vsel %vm357, %v1249, 0
      %1268 = vmatprep.subr.bf16.mxu0 %v1241
      %1269 = vmatpush1.bf16.msra.mxu0 %v1240
      %1270 = vmatprep.subr.bf16.mxu0 %v1243
      %1271 = vmatpush1.bf16.msra.mxu0 %v1242
      %1272 = vmatprep.subr.bf16.mxu0 %v1245
      %1273 = vmatpush1.bf16.msra.mxu0 %v1244
      %1274 = vmatprep.subr.bf16.mxu0 %v1247
      %1275 = vmatpush1.bf16.msra.mxu0 %v1246
      %1276 = vmatprep.subr.bf16.mxu0 %v1266
      %1277 = vmatpush1.bf16.msra.mxu0 %v1263
      %1278 = vmatprep.subr.bf16.mxu0 0
      %1279 = vmatpush1.bf16.msra.mxu0 0
      %1280 = vmatprep.subr.bf16.mxu0 0
      %1281 = vmatpush1.bf16.msra.mxu0 0
      %1282 = vmatprep.subr.bf16.mxu0 0
      %1283 = vmatpush1.bf16.msra.mxu0 0
      %1284 = vmatprep.subr.bf16.mxu0 0
      %1285 = vmatpush1.bf16.msra.mxu0 0
      %1286 = vmatprep.subr.bf16.mxu0 0
      %1287 = vmatpush1.bf16.msra.mxu0 0
      %1288 = vmatprep.subr.bf16.mxu0 0
      %1289 = vmatpush1.bf16.msra.mxu0 0
      %1290 = vmatprep.subr.bf16.mxu0 0
      %1291 = vmatpush1.bf16.msra.mxu0 0
      %1292 = vmatprep.subr.bf16.mxu0 0
      %1293 = vmatpush1.bf16.msra.mxu0 0
      %1294 = vmatprep.subr.bf16.mxu0 0
      %1295 = vmatpush1.bf16.msra.mxu0 0
      %1296 = vmatprep.subr.bf16.mxu0 0
      %1297 = vmatpush1.bf16.msra.mxu0 0
      %1298 = vmatprep.subr.bf16.mxu0 0
      %1299 = vmatpush1.bf16.msra.mxu0 0
      %1300 = vmatprep.mubr.bf16.mxu0 0
      %1301 = vmatmul.mubr.bf16.gmra.mrb[0].mxu0 %v1260
      %v1302 = vpop.f32.mrb[0].mxu0
      %v1303 = vadd.f32 %v1211, %v1302
      %v1304 = vpop.f32.mrb[0].mxu0
      %v1305 = vadd.f32 %v1211, %v1304
      %v1306 = vpop.f32.mrb[0].mxu0
      %v1307 = vpop.f32.mrb[0].mxu0
      %1308 = vdwg.mxu0
      %v1309 = vmax.f32 %v1303, 0.0
      %v1310 = vmax.f32 %v1305, 0.0
      %s1311 = scalar_lea.vmem %s8, 8
      %v1312 = vld [vmem:[%s1311] sm:$0xf]
      %1314 = vset.pattern.permute.xlu0 0
      %1315 = vperm.xlu0 %1314, %v1312
      %v1316 = vpop.permute.xlu0 %1315
      %v1318 = vmul.f32 %v1309, %v1316
      %v1319 = vmul.f32 %v1310, %v1316
      %s1320 = scalar_lea.vmem %s8, 12
      %v1321 = vld [vmem:[%s1320] sm:$0xf]
      %1323 = vset.pattern.permute.xlu0 0
      %1324 = vperm.xlu0 %1323, %v1321
      %v1325 = vpop.permute.xlu0 %1324
      %v1327 = vadd.f32 %v1318, %v1325
      %v1328 = vadd.f32 %v1319, %v1325
      %1329 = vrot.lane.b32.xlu0 %v1327, 17
      %v1330 = vpop.permute.xlu0 %1329
      %1331 = vrot.lane.b32.xlu0 %v1328, 17
      %v1332 = vpop.permute.xlu0 %1331
      %v1333 = vsel %vm929, %v1330, %v1332
      %v1334 = vsel %vm929, %v1332, %v1330
      %v1335 = vld [vmem:[%s7] ss:$8 sm:$0x3]
      %v1337 = vlaneseq
      %v1338 = vshrl.u32 %v1337, 7
      %v1339 = vsub.s32 0, %v1338
      %v1340 = vrot.slane %v1335, %v1339
      %v1341 = vlaneseq
      %v1342 = vshrl.u32 %v1341, 7
      %v1343 = vsub.s32 1, %v1342
      %v1344 = vrot.slane %v1335, %v1343
      %v1347 = vmul.f32 %v1334, %v1340
      %v1348 = vmul.f32 %v1333, %v1344
      %v1349 = vpack.c.bf16 %v1347, %v1347
      %v1350 = vpack.c.bf16 %v1348, %v1348
      %v1353 = vunpack.c.l.b16 %v1349
      %v1354 = vunpack.c.l.b16 %v1350
      %v1355 = vpack.c.b16 %v1354, %v1353
      %1357 = vst [vmem:[#allocation3] sm:$0x33] %v1355
      %1358 = vrot.lane.b32.xlu0 %v1327, 16
      %v1359 = vpop.permute.xlu0 %1358
      %1360 = vrot.lane.b32.xlu0 %v1328, 16
      %v1361 = vpop.permute.xlu0 %1360
      %v1362 = vsel %vm959, %v1359, %v1361
      %v1363 = vsel %vm959, %v1361, %v1359
      %v1364 = vld [vmem:[%s962] ss:$8 sm:$0x3]
      %v1366 = vlaneseq
      %v1367 = vshrl.u32 %v1366, 7
      %v1368 = vsub.s32 0, %v1367
      %v1369 = vrot.slane %v1364, %v1368
      %v1370 = vlaneseq
      %v1371 = vshrl.u32 %v1370, 7
      %v1372 = vsub.s32 1, %v1371
      %v1373 = vrot.slane %v1364, %v1372
      %v1376 = vmul.f32 %v1363, %v1369
      %v1377 = vmul.f32 %v1362, %v1373
      %v1378 = vpack.c.bf16 %v1376, %v1376
      %v1379 = vpack.c.bf16 %v1377, %v1377
      %v1382 = vunpack.c.l.b16 %v1378
      %v1383 = vunpack.c.l.b16 %v1379
      %v1384 = vpack.c.b16 %v1383, %v1382
      %1386 = vst [vmem:[#allocation3 + $0x8] sm:$0x33] %v1384
      %1387 = vrot.lane.b32.xlu0 %v1327, 15
      %v1388 = vpop.permute.xlu0 %1387
      %1389 = vrot.lane.b32.xlu0 %v1328, 15
      %v1390 = vpop.permute.xlu0 %1389
      %v1391 = vsel %vm990, %v1388, %v1390
      %v1392 = vsel %vm990, %v1390, %v1388
      %v1393 = vld [vmem:[%s993] ss:$8 sm:$0x3]
      %v1395 = vlaneseq
      %v1396 = vshrl.u32 %v1395, 7
      %v1397 = vsub.s32 0, %v1396
      %v1398 = vrot.slane %v1393, %v1397
      %v1399 = vlaneseq
      %v1400 = vshrl.u32 %v1399, 7
      %v1401 = vsub.s32 1, %v1400
      %v1402 = vrot.slane %v1393, %v1401
      %v1405 = vmul.f32 %v1392, %v1398
      %v1406 = vmul.f32 %v1391, %v1402
      %v1407 = vpack.c.bf16 %v1405, %v1405
      %v1408 = vpack.c.bf16 %v1406, %v1406
      %v1411 = vunpack.c.l.b16 %v1407
      %v1412 = vunpack.c.l.b16 %v1408
      %v1413 = vpack.c.b16 %v1412, %v1411
      %1415 = vst [vmem:[#allocation3 + $0x10] sm:$0x33] %v1413
      %1416 = vrot.lane.b32.xlu0 %v1327, 1
      %v1417 = vpop.permute.xlu0 %1416
      %1418 = vrot.lane.b32.xlu0 %v1328, 1
      %v1419 = vpop.permute.xlu0 %1418
      %v1420 = vsel %vm1021, %v1417, %v1419
      %v1421 = vsel %vm1021, %v1419, %v1417
      %v1422 = vld [vmem:[%s1024] ss:$8 sm:$0x3]
      %v1424 = vlaneseq
      %v1425 = vshrl.u32 %v1424, 7
      %v1426 = vsub.s32 0, %v1425
      %v1427 = vrot.slane %v1422, %v1426
      %v1428 = vlaneseq
      %v1429 = vshrl.u32 %v1428, 7
      %v1430 = vsub.s32 1, %v1429
      %v1431 = vrot.slane %v1422, %v1430
      %v1434 = vmul.f32 %v1421, %v1427
      %v1435 = vmul.f32 %v1420, %v1431
      %v1436 = vpack.c.bf16 %v1434, %v1434
      %v1437 = vpack.c.bf16 %v1435, %v1435
      %v1440 = vunpack.c.l.b16 %v1436
      %v1441 = vunpack.c.l.b16 %v1437
      %v1442 = vpack.c.b16 %v1441, %v1440
      %1444 = vst [vmem:[#allocation3 + $0x18] sm:$0x33] %v1442
      %v1445 = vld [vmem:[%s1048] ss:$8 sm:$0x3]
      %v1447 = vlaneseq
      %v1448 = vshrl.u32 %v1447, 7
      %v1449 = vsub.s32 0, %v1448
      %v1450 = vrot.slane %v1445, %v1449
      %v1451 = vlaneseq
      %v1452 = vshrl.u32 %v1451, 7
      %v1453 = vsub.s32 1, %v1452
      %v1454 = vrot.slane %v1445, %v1453
      %v1457 = vmul.f32 %v1327, %v1450
      %v1458 = vmul.f32 %v1328, %v1454
      %v1459 = vpack.c.bf16 %v1457, %v1457
      %v1460 = vpack.c.bf16 %v1458, %v1458
      %v1463 = vunpack.c.l.b16 %v1459
      %v1464 = vunpack.c.l.b16 %v1460
      %v1465 = vpack.c.b16 %v1464, %v1463
      %1467 = vst [vmem:[#allocation3 + $0x20] sm:$0x33] %v1465
      %1468 = vrot.lane.b32.xlu0 %v1327, 127
      %v1469 = vpop.permute.xlu0 %1468
      %1470 = vrot.lane.b32.xlu0 %v1328, 127
      %v1471 = vpop.permute.xlu0 %1470
      %v1472 = vsel %vm1076, %v1469, %v1471
      %v1473 = vsel %vm1076, %v1471, %v1469
      %v1474 = vld [vmem:[%s1079] ss:$8 sm:$0x3]
      %v1476 = vlaneseq
      %v1477 = vshrl.u32 %v1476, 7
      %v1478 = vsub.s32 0, %v1477
      %v1479 = vrot.slane %v1474, %v1478
      %v1480 = vlaneseq
      %v1481 = vshrl.u32 %v1480, 7
      %v1482 = vsub.s32 1, %v1481
      %v1483 = vrot.slane %v1474, %v1482
      %v1486 = vmul.f32 %v1472, %v1479
      %v1487 = vmul.f32 %v1473, %v1483
      %v1488 = vpack.c.bf16 %v1486, %v1486
      %v1489 = vpack.c.bf16 %v1487, %v1487
      %v1492 = vunpack.c.l.b16 %v1488
      %v1493 = vunpack.c.l.b16 %v1489
      %v1494 = vpack.c.b16 %v1493, %v1492
      %1496 = vst [vmem:[#allocation3 + $0x28] sm:$0x33] %v1494
      %1497 = vrot.lane.b32.xlu0 %v1327, 113
      %v1498 = vpop.permute.xlu0 %1497
      %1499 = vrot.lane.b32.xlu0 %v1328, 113
      %v1500 = vpop.permute.xlu0 %1499
      %v1501 = vsel %vm1107, %v1498, %v1500
      %v1502 = vsel %vm1107, %v1500, %v1498
      %v1503 = vld [vmem:[%s1110] ss:$8 sm:$0x3]
      %v1505 = vlaneseq
      %v1506 = vshrl.u32 %v1505, 7
      %v1507 = vsub.s32 0, %v1506
      %v1508 = vrot.slane %v1503, %v1507
      %v1509 = vlaneseq
      %v1510 = vshrl.u32 %v1509, 7
      %v1511 = vsub.s32 1, %v1510
      %v1512 = vrot.slane %v1503, %v1511
      %v1515 = vmul.f32 %v1501, %v1508
      %v1516 = vmul.f32 %v1502, %v1512
      %v1517 = vpack.c.bf16 %v1515, %v1515
      %v1518 = vpack.c.bf16 %v1516, %v1516
      %v1521 = vunpack.c.l.b16 %v1517
      %v1522 = vunpack.c.l.b16 %v1518
      %v1523 = vpack.c.b16 %v1522, %v1521
      %1525 = vst [vmem:[#allocation3 + $0x30] sm:$0x33] %v1523
      %1526 = vrot.lane.b32.xlu0 %v1327, 112
      %v1527 = vpop.permute.xlu0 %1526
      %1528 = vrot.lane.b32.xlu0 %v1328, 112
      %v1529 = vpop.permute.xlu0 %1528
      %v1530 = vsel %vm1138, %v1527, %v1529
      %v1531 = vsel %vm1138, %v1529, %v1527
      %v1532 = vld [vmem:[%s1141] ss:$8 sm:$0x3]
      %v1534 = vlaneseq
      %v1535 = vshrl.u32 %v1534, 7
      %v1536 = vsub.s32 0, %v1535
      %v1537 = vrot.slane %v1532, %v1536
      %v1538 = vlaneseq
      %v1539 = vshrl.u32 %v1538, 7
      %v1540 = vsub.s32 1, %v1539
      %v1541 = vrot.slane %v1532, %v1540
      %v1544 = vmul.f32 %v1530, %v1537
      %v1545 = vmul.f32 %v1531, %v1541
      %v1546 = vpack.c.bf16 %v1544, %v1544
      %v1547 = vpack.c.bf16 %v1545, %v1545
      %v1550 = vunpack.c.l.b16 %v1546
      %v1551 = vunpack.c.l.b16 %v1547
      %v1552 = vpack.c.b16 %v1551, %v1550
      %1554 = vst [vmem:[#allocation3 + $0x38] sm:$0x33] %v1552
      %1555 = vrot.lane.b32.xlu0 %v1327, 111
      %v1556 = vpop.permute.xlu0 %1555
      %1557 = vrot.lane.b32.xlu0 %v1328, 111
      %v1558 = vpop.permute.xlu0 %1557
      %v1559 = vsel %vm1169, %v1556, %v1558
      %v1560 = vsel %vm1169, %v1558, %v1556
      %v1561 = vld [vmem:[%s1172] ss:$8 sm:$0x3]
      %v1563 = vlaneseq
      %v1564 = vshrl.u32 %v1563, 7
      %v1565 = vsub.s32 0, %v1564
      %v1566 = vrot.slane %v1561, %v1565
      %v1567 = vlaneseq
      %v1568 = vshrl.u32 %v1567, 7
      %v1569 = vsub.s32 1, %v1568
      %v1570 = vrot.slane %v1561, %v1569
      %v1573 = vmul.f32 %v1559, %v1566
      %v1574 = vmul.f32 %v1560, %v1570
      %v1575 = vpack.c.bf16 %v1573, %v1573
      %v1576 = vpack.c.bf16 %v1574, %v1574
      %v1579 = vunpack.c.l.b16 %v1575
      %v1580 = vunpack.c.l.b16 %v1576
      %v1581 = vpack.c.b16 %v1580, %v1579
      %1583 = vst [vmem:[#allocation3 + $0x40] sm:$0x33] %v1581
      %v1584 = vld [vmem:[%s5] sm:$0x3]
      %v1585 = vld [vmem:[#allocation3] sm:$0xff]
      %v1586 = vld [vmem:[#allocation3 + $0x8] sm:$0xff]
      %v1587 = vld [vmem:[#allocation3 + $0x10] sm:$0xff]
      %v1588 = vld [vmem:[#allocation3 + $0x18] sm:$0xff]
      %v1589 = vld [vmem:[#allocation3 + $0x20] sm:$0xff]
      %v1590 = vld [vmem:[#allocation3 + $0x28] sm:$0xff]
      %v1591 = vld [vmem:[#allocation3 + $0x30] sm:$0xff]
      %v1592 = vld [vmem:[#allocation3 + $0x38] sm:$0xff]
      %v1593 = vld [vmem:[#allocation3 + $0x40] sm:$0xff]
      %s1594 = scalar_lea.vmem %s8, 16
      %v1595 = vld [vmem:[%s1594] sm:$0xf]
      %1597 = vset.pattern.permute.xlu0 0
      %1598 = vperm.xlu0 %1597, %v1595
      %v1599 = vpop.permute.xlu0 %1598
      %v1610 = vunpack.c.l.b16 %v1585
      %v1611 = vunpack.c.h.b16 %v1585
      %v1612 = vunpack.c.l.b16 %v1586
      %v1613 = vunpack.c.h.b16 %v1586
      %v1614 = vunpack.c.l.b16 %v1587
      %v1615 = vunpack.c.h.b16 %v1587
      %v1616 = vunpack.c.l.b16 %v1588
      %v1617 = vunpack.c.h.b16 %v1588
      %v1618 = vunpack.c.l.b16 %v1589
      %v1619 = vunpack.c.h.b16 %v1589
      %v1620 = vunpack.c.l.b16 %v1590
      %v1621 = vunpack.c.h.b16 %v1590
      %v1622 = vunpack.c.l.b16 %v1591
      %v1623 = vunpack.c.h.b16 %v1591
      %v1624 = vunpack.c.l.b16 %v1592
      %v1625 = vunpack.c.h.b16 %v1592
      %v1626 = vunpack.c.l.b16 %v1593
      %v1627 = vunpack.c.h.b16 %v1593
      %v1628 = vpack.c.b16 %v1612, %v1610
      %v1629 = vpack.c.b16 %v1613, %v1611
      %v1630 = vpack.c.b16 %v1616, %v1614
      %v1631 = vpack.c.b16 %v1617, %v1615
      %v1632 = vpack.c.b16 %v1620, %v1618
      %v1633 = vpack.c.b16 %v1621, %v1619
      %v1634 = vpack.c.b16 %v1624, %v1622
      %v1635 = vpack.c.b16 %v1625, %v1623
      %v1636 = vpack.c.b16 %v1626, %v1626
      %v1637 = vpack.c.b16 %v1627, %v1627
      %v1647 = vsel %vm1258, %v1584, 0
      %v1650 = vsel %vm357, %v1636, 0
      %v1653 = vsel %vm357, %v1637, 0
      %1655 = vmatprep.subr.bf16.mxu0 %v1629
      %1656 = vmatpush1.bf16.msra.mxu0 %v1628
      %1657 = vmatprep.subr.bf16.mxu0 %v1631
      %1658 = vmatpush1.bf16.msra.mxu0 %v1630
      %1659 = vmatprep.subr.bf16.mxu0 %v1633
      %1660 = vmatpush1.bf16.msra.mxu0 %v1632
      %1661 = vmatprep.subr.bf16.mxu0 %v1635
      %1662 = vmatpush1.bf16.msra.mxu0 %v1634
      %1663 = vmatprep.subr.bf16.mxu0 %v1653
      %1664 = vmatpush1.bf16.msra.mxu0 %v1650
      %1665 = vmatprep.subr.bf16.mxu0 0
      %1666 = vmatpush1.bf16.msra.mxu0 0
      %1667 = vmatprep.subr.bf16.mxu0 0
      %1668 = vmatpush1.bf16.msra.mxu0 0
      %1669 = vmatprep.subr.bf16.mxu0 0
      %1670 = vmatpush1.bf16.msra.mxu0 0
      %1671 = vmatprep.subr.bf16.mxu0 0
      %1672 = vmatpush1.bf16.msra.mxu0 0
      %1673 = vmatprep.subr.bf16.mxu0 0
      %1674 = vmatpush1.bf16.msra.mxu0 0
      %1675 = vmatprep.subr.bf16.mxu0 0
      %1676 = vmatpush1.bf16.msra.mxu0 0
      %1677 = vmatprep.subr.bf16.mxu0 0
      %1678 = vmatpush1.bf16.msra.mxu0 0
      %1679 = vmatprep.subr.bf16.mxu0 0
      %1680 = vmatpush1.bf16.msra.mxu0 0
      %1681 = vmatprep.subr.bf16.mxu0 0
      %1682 = vmatpush1.bf16.msra.mxu0 0
      %1683 = vmatprep.subr.bf16.mxu0 0
      %1684 = vmatpush1.bf16.msra.mxu0 0
      %1685 = vmatprep.subr.bf16.mxu0 0
      %1686 = vmatpush1.bf16.msra.mxu0 0
      %1687 = vmatprep.mubr.bf16.mxu0 0
      %1688 = vmatmul.mubr.bf16.gmra.mrb[0].mxu0 %v1647
      %v1689 = vpop.f32.mrb[0].mxu0
      %v1690 = vadd.f32 %v1599, %v1689
      %v1691 = vpop.f32.mrb[0].mxu0
      %v1692 = vadd.f32 %v1599, %v1691
      %v1693 = vpop.f32.mrb[0].mxu0
      %v1694 = vpop.f32.mrb[0].mxu0
      %1695 = vdwg.mxu0
      %v1696 = vmax.f32 %v1690, 0.0
      %v1697 = vmax.f32 %v1692, 0.0
      %s1698 = scalar_lea.vmem %s8, 20
      %v1699 = vld [vmem:[%s1698] sm:$0xf]
      %1701 = vset.pattern.permute.xlu0 0
      %1702 = vperm.xlu0 %1701, %v1699
      %v1703 = vpop.permute.xlu0 %1702
      %v1705 = vmul.f32 %v1696, %v1703
      %v1706 = vmul.f32 %v1697, %v1703
      %s1707 = scalar_lea.vmem %s8, 24
      %v1708 = vld [vmem:[%s1707] sm:$0xf]
      %1710 = vset.pattern.permute.xlu0 0
      %1711 = vperm.xlu0 %1710, %v1708
      %v1712 = vpop.permute.xlu0 %1711
      %v1714 = vadd.f32 %v1705, %v1712
      %v1715 = vadd.f32 %v1706, %v1712
      %v1716 = vld [vmem:[%s6] sm:$0x3]
      %v1717 = vpack.c.bf16 %v921, %v921
      %v1718 = vpack.c.bf16 %v922, %v922
      %s1719 = scalar_lea.vmem %s8, 28
      %v1720 = vld [vmem:[%s1719] sm:$0xf]
      %1722 = vset.pattern.permute.xlu0 0
      %1723 = vperm.xlu0 %1722, %v1720
      %v1724 = vpop.permute.xlu0 %1723
      %v1727 = vsel %vm353, %v1716, 0
      %v1730 = vsel %vm357, %v1717, 0
      %v1733 = vsel %vm357, %v1718, 0
      %1735 = vmatprep.subr.bf16.mxu0 %v1733
      %1736 = vmatpush1.bf16.msra.mxu0 %v1730
      %1737 = vmatprep.subr.bf16.mxu0 0
      %1738 = vmatpush1.bf16.msra.mxu0 0
      %1739 = vmatprep.subr.bf16.mxu0 0
      %1740 = vmatpush1.bf16.msra.mxu0 0
      %1741 = vmatprep.subr.bf16.mxu0 0
      %1742 = vmatpush1.bf16.msra.mxu0 0
      %1743 = vmatprep.subr.bf16.mxu0 0
      %1744 = vmatpush1.bf16.msra.mxu0 0
      %1745 = vmatprep.subr.bf16.mxu0 0
      %1746 = vmatpush1.bf16.msra.mxu0 0
      %1747 = vmatprep.subr.bf16.mxu0 0
      %1748 = vmatpush1.bf16.msra.mxu0 0
      %1749 = vmatprep.subr.bf16.mxu0 0
      %1750 = vmatpush1.bf16.msra.mxu0 0
      %1751 = vmatprep.subr.bf16.mxu0 0
      %1752 = vmatpush1.bf16.msra.mxu0 0
      %1753 = vmatprep.subr.bf16.mxu0 0
      %1754 = vmatpush1.bf16.msra.mxu0 0
      %1755 = vmatprep.subr.bf16.mxu0 0
      %1756 = vmatpush1.bf16.msra.mxu0 0
      %1757 = vmatprep.subr.bf16.mxu0 0
      %1758 = vmatpush1.bf16.msra.mxu0 0
      %1759 = vmatprep.subr.bf16.mxu0 0
      %1760 = vmatpush1.bf16.msra.mxu0 0
      %1761 = vmatprep.subr.bf16.mxu0 0
      %1762 = vmatpush1.bf16.msra.mxu0 0
      %1763 = vmatprep.subr.bf16.mxu0 0
      %1764 = vmatpush1.bf16.msra.mxu0 0
      %1765 = vmatprep.subr.bf16.mxu0 0
      %1766 = vmatpush1.bf16.msra.mxu0 0
      %1767 = vmatprep.mubr.bf16.mxu0 0
      %1768 = vmatmul.mubr.bf16.gmra.mrb[0].mxu0 %v1727
      %v1769 = vpop.f32.mrb[0].mxu0
      %v1770 = vadd.f32 %v1724, %v1769
      %v1771 = vpop.f32.mrb[0].mxu0
      %v1772 = vadd.f32 %v1724, %v1771
      %v1773 = vpop.f32.mrb[0].mxu0
      %v1774 = vpop.f32.mrb[0].mxu0
      %1775 = vdwg.mxu0
      %s1776 = scalar_lea.vmem %s8, 32
      %v1777 = vld [vmem:[%s1776] sm:$0xf]
      %1779 = vset.pattern.permute.xlu0 0
      %1780 = vperm.xlu0 %1779, %v1777
      %v1781 = vpop.permute.xlu0 %1780
      %v1783 = vmul.f32 %v1770, %v1781
      %v1784 = vmul.f32 %v1772, %v1781
      %s1785 = scalar_lea.vmem %s8, 36
      %v1786 = vld [vmem:[%s1785] sm:$0xf]
      %1788 = vset.pattern.permute.xlu0 0
      %1789 = vperm.xlu0 %1788, %v1786
      %v1790 = vpop.permute.xlu0 %1789
      %v1792 = vadd.f32 %v1783, %v1790
      %v1793 = vadd.f32 %v1784, %v1790
      %v1794 = vadd.f32 %v1714, %v1792
      %v1795 = vadd.f32 %v1715, %v1793
      %v1798 = vcombine.low %v1794, %v1795
      %1800 = vst [vmem:[%s349] sm:$0xff] %v1798
      %p1801 = scmp.lt.s32.totalorder %s20, 1
      %s1802 = scalar_select %p1801, %s20, 1
      %s1803 = smul.addr %s1802, 2
      %s1804 = smul.addr %s1803, 4
      %s1805 = scalar_lea.vmem %s9, %s1804
      // Predicated region
      $region57: #{decoder_block_forward.1} parent=55 // pred_check
        %p1806 = pneg %p237
      $region58: #{decoder_block_forward.1} parent=55 // pred_check_branch
        %1808 = sbr.rel (%p1806) target = $region60
      $region59: #{decoder_block_forward.1} parent=55 // pred_region
        _
      $region60: #{decoder_block_forward.1} parent=55 // pred_fallthru
        _
    $region56: #{decoder_block_forward.1} parent=5 // pred_fallthru
      _
    %p1809 = scmp.le.s32.totalorder 2, %s15
    // Predicated region
    $region61: #{decoder_block_forward.1} parent=5 // pred_check
      %p1810 = pneg %p1809
    $region62: #{decoder_block_forward.1} parent=5 // pred_check_branch
      %1812 = sbr.rel (%p1810) target = $region64
    $region63: #{decoder_block_forward.1} parent=5 // pred_region
      %s1813 = ssub.s32 %s15, 2
      // Predicated region
      $region65: #{decoder_block_forward.1} parent=63 // pred_check
        %p1814 = pneg %p243
      $region66: #{decoder_block_forward.1} parent=63 // pred_check_branch
        %1816 = sbr.rel (%p1814) target = $region68
      $region67: #{decoder_block_forward.1} parent=63 // pred_region
        %p1817 = scmp.lt.s32.totalorder %s21, 1
        %s1818 = scalar_select %p1817, %s21, 1
        %s1819 = smul.addr %s1818, 2
        %s1820 = smul.addr %s1819, 4
        %s1821 = scalar_lea.vmem %s9, %s1820
      $region68: #{decoder_block_forward.1} parent=63 // pred_fallthru
        _
    $region64: #{decoder_block_forward.1} parent=5 // pred_fallthru
      _
  $region6: #{decoder_block_forward.1} parent=0 // loop_footer
    %s19 = sadd.s32 1, %s15
  $region7: #{decoder_block_forward.1} parent=0 // loop_footer_branch
    %14 = sbr.rel target = $region3
  $region8: #{decoder_block_forward.1} parent=0 // loop_exit
    _

</llo_original>
